<compile_context>
chip_gen: v5e
topology: v5e:2x2
jax: 0.10.0
libtpu: 0.0.40
codegen_flags: <defaults>
</compile_context>

<pallas_src>
import jax
import jax.numpy as jnp
from jax.experimental import pallas as pl
from jax.experimental.pallas import tpu as pltpu


def _round_up(x, m):
    return (x + m - 1) // m * m


# ---------------------------------------------------------------------------
# Kernel 1: fused conv + bias + ReLU + 2x2 maxpool (one GEMM per pooling tap).
#   w:   (Cout_p, Kd_p)   bf16
#   b:   (Cout_p, 1)      f32
#   cXX: (Kd_p,   MT)     bf16   (im2col columns of pooling tap XX)
#   o:   (Cout_p, MT)     f32    (pooled activation, lane-dense)
# ---------------------------------------------------------------------------
def _conv_pool_kernel(w_ref, b_ref, c00_ref, c01_ref, c10_ref, c11_ref, o_ref):
    w = w_ref[...]
    acc = jnp.dot(w, c00_ref[...], preferred_element_type=jnp.float32)
    acc = jnp.maximum(acc, jnp.dot(w, c01_ref[...], preferred_element_type=jnp.float32))
    acc = jnp.maximum(acc, jnp.dot(w, c10_ref[...], preferred_element_type=jnp.float32))
    acc = jnp.maximum(acc, jnp.dot(w, c11_ref[...], preferred_element_type=jnp.float32))
    acc = jnp.maximum(acc + b_ref[...], 0.0)          # bias + ReLU epilogue (f32 VPU)
    o_ref[...] = acc.astype(o_ref.dtype)


def conv_relu_pool(act_cnhw, w, b):
    """act: (Cin, N, H, W) f32; w: (Cout, Cin, K, K); b: (Cout,).
    Returns the pooled activation (Cout, N, Hp, Wp) f32,
    Hp=(H-K+1)//2, Wp=(W-K+1)//2.  Valid conv, stride 1, then 2x2 maxpool."""
    Cin, N, H, W = act_cnhw.shape
    Cout, Cin2, K, _ = w.shape
    assert Cin == Cin2
    Ho, Wo = H - K + 1, W - K + 1
    Hp, Wp = Ho // 2, Wo // 2
    M = N * Hp * Wp                      # pooled spatial*batch -> lane dim
    Kd = Cin * K * K                     # contraction dim, order (ci, kh, kw)

    Cout_p = _round_up(Cout, 8)
    Kd_p = _round_up(Kd, 8)
    MT = 256 if M > 128 else 128
    M_p = _round_up(M, MT)

    # ---- XLA glue: per-pooling-tap im2col, already transposed to (Kd, M) ----
    # TODO(synk): for large batches, do the 25-tap accumulation inside the
    # kernel instead of materializing the im2col columns in HBM.
    taps = []
    for dh in range(2):
        for dw in range(2):
            cols = []
            for kh in range(K):
                for kw in range(K):
                    sl = act_cnhw[:, :,
                                  dh + kh: dh + kh + 2 * Hp: 2,
                                  dw + kw: dw + kw + 2 * Wp: 2]   # (Cin,N,Hp,Wp)
                    cols.append(sl)
            c = jnp.stack(cols, axis=1).reshape(Kd, M)            # (ci,kh,kw) x (n,ph,pw)
            c = jnp.pad(c, ((0, Kd_p - Kd), (0, M_p - M))).astype(jnp.bfloat16)
            taps.append(c)

    w_mat = w.reshape(Cout, Kd)                                   # matches weight.view(Cout,-1)
    w_mat = jnp.pad(w_mat, ((0, Cout_p - Cout), (0, Kd_p - Kd))).astype(jnp.bfloat16)
    b_col = jnp.pad(b, (0, Cout_p - Cout)).reshape(Cout_p, 1).astype(jnp.float32)

    grid = (M_p // MT,)
    cost = pl.CostEstimate(
        flops=4 * 2 * Cout_p * Kd_p * M_p,
        transcendentals=0,
        bytes_accessed=(Cout_p * Kd_p + 4 * Kd_p * M_p) * 2
        + (Cout_p * M_p + Cout_p) * 4,
    )
    out = pl.pallas_call(
        _conv_pool_kernel,
        out_shape=jax.ShapeDtypeStruct((Cout_p, M_p), jnp.float32),
        grid=grid,
        in_specs=[
            pl.BlockSpec((Cout_p, Kd_p), lambda i: (0, 0)),   # weights (resident)
            pl.BlockSpec((Cout_p, 1), lambda i: (0, 0)),      # bias
            pl.BlockSpec((Kd_p, MT), lambda i: (0, i)),       # tap (0,0)
            pl.BlockSpec((Kd_p, MT), lambda i: (0, i)),       # tap (0,1)
            pl.BlockSpec((Kd_p, MT), lambda i: (0, i)),       # tap (1,0)
            pl.BlockSpec((Kd_p, MT), lambda i: (0, i)),       # tap (1,1)
        ],
        out_specs=pl.BlockSpec((Cout_p, MT), lambda i: (0, i)),
        compiler_params=pltpu.CompilerParams(dimension_semantics=("parallel",)),
        cost_estimate=cost,
    )(w_mat, b_col, *taps)

    return out[:Cout, :M].reshape(Cout, N, Hp, Wp)


# ---------------------------------------------------------------------------
# Kernel 2: fused fc1+relu -> fc2+relu -> fc3+relu (one kernel, VMEM-resident
# intermediates, hidden/output dims padded to 128 for lane-dense stores).
# ---------------------------------------------------------------------------
def _fc3_kernel(x_ref, w1_ref, b1_ref, w2_ref, b2_ref, w3_ref, b3_ref, o_ref):
    h = jnp.dot(x_ref[...], w1_ref[...], preferred_element_type=jnp.float32)
    h = jnp.maximum(h + b1_ref[...], 0.0)                         # relu3
    h = jnp.dot(h.astype(w2_ref.dtype), w2_ref[...], preferred_element_type=jnp.float32)
    h = jnp.maximum(h + b2_ref[...], 0.0)                         # relu4
    h = jnp.dot(h.astype(w3_ref.dtype), w3_ref[...], preferred_element_type=jnp.float32)
    h = jnp.maximum(h + b3_ref[...], 0.0)                         # relu5
    o_ref[...] = h.astype(o_ref.dtype)


def fc_stack(x, params):
    """x: (N, 256) f32 -> (N, 10) f32, three fused Linear+ReLU layers."""
    N, D = x.shape
    assert D == 256
    NP = _round_up(N, 8)
    NT = min(NP, 256)                    # row tile (parallel grid at large batch)
    NPP = _round_up(NP, NT)

    def padw(w, rin, cout):
        r, c = w.shape
        return jnp.pad(w, ((0, rin - r), (0, cout - c))).astype(jnp.bfloat16)

    def padb(b, n):
        return jnp.pad(b, (0, n - b.shape[0])).reshape(1, n).astype(jnp.float32)

    w1 = padw(params["fc1_w"], 256, 128); b1 = padb(params["fc1_b"], 128)
    w2 = padw(params["fc2_w"], 128, 128); b2 = padb(params["fc2_b"], 128)
    w3 = padw(params["fc3_w"], 128, 128); b3 = padb(params["fc3_b"], 128)
    xp = jnp.pad(x, ((0, NPP - N), (0, 0))).astype(jnp.bfloat16)

    out = pl.pallas_call(
        _fc3_kernel,
        out_shape=jax.ShapeDtypeStruct((NPP, 128), jnp.float32),
        grid=(NPP // NT,),
        in_specs=[
            pl.BlockSpec((NT, 256), lambda i: (i, 0)),
            pl.BlockSpec((256, 128), lambda i: (0, 0)),
            pl.BlockSpec((1, 128), lambda i: (0, 0)),
            pl.BlockSpec((128, 128), lambda i: (0, 0)),
            pl.BlockSpec((1, 128), lambda i: (0, 0)),
            pl.BlockSpec((128, 128), lambda i: (0, 0)),
            pl.BlockSpec((1, 128), lambda i: (0, 0)),
        ],
        out_specs=pl.BlockSpec((NT, 128), lambda i: (i, 0)),
        compiler_params=pltpu.CompilerParams(dimension_semantics=("parallel",)),
        cost_estimate=pl.CostEstimate(
            flops=2 * NPP * (256 * 128 + 128 * 128 + 128 * 128),
            transcendentals=0,
            bytes_accessed=(NPP * 256 + 256 * 128 + 2 * 128 * 128) * 2
            + (3 * 128 + NPP * 128) * 4,
        ),
    )(xp, w1, b1, w2, b2, w3, b3)
    return out[:N, :10]


# ---------------------------------------------------------------------------
# LeNet5 forward
# ---------------------------------------------------------------------------
def init_params(key):
    ks = jax.random.split(key, 8)
    return {
        # conv_with_bias(1, 6, k=5): weight [6,1,5,5], bias [6]
        "conv1_w": 0.1 * jax.random.normal(ks[0], (6, 1, 5, 5), jnp.float32),
        "conv1_b": 0.1 * jax.random.normal(ks[1], (6,), jnp.float32),
        # conv_with_bias(6, 16, k=5): weight [16,6,5,5], bias [16]
        "conv2_w": 0.1 * jax.random.normal(ks[2], (16, 6, 5, 5), jnp.float32),
        "conv2_b": 0.1 * jax.random.normal(ks[3], (16,), jnp.float32),
        # nn.Linear(256,120) / (120,84) / (84,10), stored as [in, out]
        "fc1_w": 0.1 * jax.random.normal(ks[4], (256, 120), jnp.float32),
        "fc1_b": jnp.zeros((120,), jnp.float32),
        "fc2_w": 0.1 * jax.random.normal(ks[5], (120, 84), jnp.float32),
        "fc2_b": jnp.zeros((84,), jnp.float32),
        "fc3_w": 0.1 * jax.random.normal(ks[6], (84, 10), jnp.float32),
        "fc3_b": jnp.zeros((10,), jnp.float32),
    }


@jax.jit
def lenet5_forward(params, x):
    # x: [N, 1, 28, 28] f32 (NCHW, as in PyTorch). Convert layout ONCE.
    N = x.shape[0]
    a = jnp.transpose(x, (1, 0, 2, 3)).astype(jnp.float32)          # (C=1, N, 28, 28)
    a = conv_relu_pool(a, params["conv1_w"], params["conv1_b"])     # (6,  N, 12, 12)
    a = conv_relu_pool(a, params["conv2_w"], params["conv2_b"])     # (16, N, 4, 4)
    # PyTorch's y.view(N, -1) flattens in (c, h, w) order:
    x_fc = jnp.transpose(a, (1, 0, 2, 3)).reshape(N, 256)           # (N, 256)
    return fc_stack(x_fc, params)                                   # (N, 10), relu5 applied


if __name__ == "__main__":
    key = jax.random.PRNGKey(0)
    k_in, k_par = jax.random.split(key)
    # LeNet5's fc1(256, ...) forces 28x28 single-channel input; small batch.
    x = jax.random.normal(k_in, (2, 1, 28, 28), jnp.float32)
    params = init_params(k_par)

    out = lenet5_forward(params, x)
    out = jax.block_until_ready(out)
    assert out.shape == (2, 10), out.shape
    assert bool(jnp.all(out >= 0.0))   # relu5 on the final logits
    print("KERNEL_OK")
</pallas_src>

<mosaic_0001>
module attributes {stable_mosaic.version = 11 : i64} {
  func.func @_conv_pool_kernel(%arg0: i32, %arg1: memref<8x32xbf16, #tpu.memory_space<vmem>>, %arg2: memref<8x1xf32, #tpu.memory_space<vmem>>, %arg3: memref<32x256xbf16, #tpu.memory_space<vmem>>, %arg4: memref<32x256xbf16, #tpu.memory_space<vmem>>, %arg5: memref<32x256xbf16, #tpu.memory_space<vmem>>, %arg6: memref<32x256xbf16, #tpu.memory_space<vmem>>, %arg7: memref<8x256xf32, #tpu.memory_space<vmem>>) attributes {dimension_semantics = [#tpu.dimension_semantics<parallel>], iteration_bounds = array<i64: 2>, scalar_prefetch = 0 : i64, scratch_operands = 0 : i64, tpu.core_type = #tpu.core_type<tc>, window_params = [{pipeline_mode = #tpu.pipeline_mode<synchronous>, transform_indices = @transform_0, window_bounds = array<i64: 8, 32>}, {pipeline_mode = #tpu.pipeline_mode<synchronous>, transform_indices = @transform_1, window_bounds = array<i64: 8, 1>}, {transform_indices = @transform_2, window_bounds = array<i64: 32, 256>}, {transform_indices = @transform_3, window_bounds = array<i64: 32, 256>}, {transform_indices = @transform_4, window_bounds = array<i64: 32, 256>}, {transform_indices = @transform_5, window_bounds = array<i64: 32, 256>}, {transform_indices = @transform_6, window_bounds = array<i64: 8, 256>}]} {
    %c0 = arith.constant 0 : index
    %c0_0 = arith.constant 0 : index
    %0 = vector.load %arg1[%c0, %c0_0] : memref<8x32xbf16, #tpu.memory_space<vmem>>, vector<8x32xbf16>
    %c0_1 = arith.constant 0 : index
    %c0_2 = arith.constant 0 : index
    %1 = vector.load %arg3[%c0_1, %c0_2] : memref<32x256xbf16, #tpu.memory_space<vmem>>, vector<32x256xbf16>
    %cst = arith.constant dense<0.000000e+00> : vector<8x256xf32>
    %2 = tpu.matmul %0, %1, %cst {dimension_numbers = #tpu.dot_dimension_numbers<[1], [0], [0], [1], [0, 0, 1, 1], [], []>} : vector<8x32xbf16>, vector<32x256xbf16>, vector<8x256xf32> -> vector<8x256xf32>
    %c0_3 = arith.constant 0 : index
    %c0_4 = arith.constant 0 : index
    %3 = vector.load %arg4[%c0_3, %c0_4] : memref<32x256xbf16, #tpu.memory_space<vmem>>, vector<32x256xbf16>
    %cst_5 = arith.constant dense<0.000000e+00> : vector<8x256xf32>
    %4 = tpu.matmul %0, %3, %cst_5 {dimension_numbers = #tpu.dot_dimension_numbers<[1], [0], [0], [1], [0, 0, 1, 1], [], []>} : vector<8x32xbf16>, vector<32x256xbf16>, vector<8x256xf32> -> vector<8x256xf32>
    %5 = arith.maximumf %2, %4 : vector<8x256xf32>
    %c0_6 = arith.constant 0 : index
    %c0_7 = arith.constant 0 : index
    %6 = vector.load %arg5[%c0_6, %c0_7] : memref<32x256xbf16, #tpu.memory_space<vmem>>, vector<32x256xbf16>
    %cst_8 = arith.constant dense<0.000000e+00> : vector<8x256xf32>
    %7 = tpu.matmul %0, %6, %cst_8 {dimension_numbers = #tpu.dot_dimension_numbers<[1], [0], [0], [1], [0, 0, 1, 1], [], []>} : vector<8x32xbf16>, vector<32x256xbf16>, vector<8x256xf32> -> vector<8x256xf32>
    %8 = arith.maximumf %5, %7 : vector<8x256xf32>
    %c0_9 = arith.constant 0 : index
    %c0_10 = arith.constant 0 : index
    %9 = vector.load %arg6[%c0_9, %c0_10] : memref<32x256xbf16, #tpu.memory_space<vmem>>, vector<32x256xbf16>
    %cst_11 = arith.constant dense<0.000000e+00> : vector<8x256xf32>
    %10 = tpu.matmul %0, %9, %cst_11 {dimension_numbers = #tpu.dot_dimension_numbers<[1], [0], [0], [1], [0, 0, 1, 1], [], []>} : vector<8x32xbf16>, vector<32x256xbf16>, vector<8x256xf32> -> vector<8x256xf32>
    %11 = arith.maximumf %8, %10 : vector<8x256xf32>
    %c0_12 = arith.constant 0 : index
    %c0_13 = arith.constant 0 : index
    %12 = vector.load %arg2[%c0_12, %c0_13] : memref<8x1xf32, #tpu.memory_space<vmem>>, vector<8x1xf32>
    %13 = vector.broadcast %12 : vector<8x1xf32> to vector<8x256xf32>
    %14 = arith.addf %11, %13 : vector<8x256xf32>
    %cst_14 = arith.constant 0.000000e+00 : f32
    %15 = vector.broadcast %cst_14 : f32 to vector<8x256xf32>
    %16 = arith.maximumf %14, %15 : vector<8x256xf32>
    %c0_15 = arith.constant 0 : index
    %c0_16 = arith.constant 0 : index
    %17 = vector.load %arg7[%c0_15, %c0_16] : memref<8x256xf32, #tpu.memory_space<vmem>>, vector<8x256xf32>
    tpu.vector_store %arg7[%c0_15, %c0_16], %16 {strides = array<i32>} : memref<8x256xf32, #tpu.memory_space<vmem>>, vector<8x256xf32>,
    return
  }
  func.func @transform_0(%arg0: i32) -> (i32, i32) {
    %c0_i32 = arith.constant 0 : i32
    %c0_i32_0 = arith.constant 0 : i32
    %c0_i32_1 = arith.constant 0 : i32
    return %c0_i32, %c0_i32_0 : i32, i32
  }
  func.func @transform_1(%arg0: i32) -> (i32, i32) {
    %c0_i32 = arith.constant 0 : i32
    %c0_i32_0 = arith.constant 0 : i32
    %c0_i32_1 = arith.constant 0 : i32
    return %c0_i32, %c0_i32_0 : i32, i32
  }
  func.func @transform_2(%arg0: i32) -> (i32, i32) {
    %c0_i32 = arith.constant 0 : i32
    %c0_i32_0 = arith.constant 0 : i32
    return %c0_i32, %arg0 : i32, i32
  }
  func.func @transform_3(%arg0: i32) -> (i32, i32) {
    %c0_i32 = arith.constant 0 : i32
    %c0_i32_0 = arith.constant 0 : i32
    return %c0_i32, %arg0 : i32, i32
  }
  func.func @transform_4(%arg0: i32) -> (i32, i32) {
    %c0_i32 = arith.constant 0 : i32
    %c0_i32_0 = arith.constant 0 : i32
    return %c0_i32, %arg0 : i32, i32
  }
  func.func @transform_5(%arg0: i32) -> (i32, i32) {
    %c0_i32 = arith.constant 0 : i32
    %c0_i32_0 = arith.constant 0 : i32
    return %c0_i32, %arg0 : i32, i32
  }
  func.func @transform_6(%arg0: i32) -> (i32, i32) {
    %c0_i32 = arith.constant 0 : i32
    %c0_i32_0 = arith.constant 0 : i32
    return %c0_i32, %arg0 : i32, i32
  }
}

module attributes {stable_mosaic.version = 11 : i64} {
  func.func @_conv_pool_kernel(%arg0: i32, %arg1: memref<16x152xbf16, #tpu.memory_space<vmem>>, %arg2: memref<16x1xf32, #tpu.memory_space<vmem>>, %arg3: memref<152x128xbf16, #tpu.memory_space<vmem>>, %arg4: memref<152x128xbf16, #tpu.memory_space<vmem>>, %arg5: memref<152x128xbf16, #tpu.memory_space<vmem>>, %arg6: memref<152x128xbf16, #tpu.memory_space<vmem>>, %arg7: memref<16x128xf32, #tpu.memory_space<vmem>>) attributes {dimension_semantics = [#tpu.dimension_semantics<parallel>], iteration_bounds = array<i64: 1>, scalar_prefetch = 0 : i64, scratch_operands = 0 : i64, tpu.core_type = #tpu.core_type<tc>, window_params = [{pipeline_mode = #tpu.pipeline_mode<synchronous>, transform_indices = @transform_0, window_bounds = array<i64: 16, 152>}, {pipeline_mode = #tpu.pipeline_mode<synchronous>, transform_indices = @transform_1, window_bounds = array<i64: 16, 1>}, {transform_indices = @transform_2, window_bounds = array<i64: 152, 128>}, {transform_indices = @transform_3, window_bounds = array<i64: 152, 128>}, {transform_indices = @transform_4, window_bounds = array<i64: 152, 128>}, {transform_indices = @transform_5, window_bounds = array<i64: 152, 128>}, {transform_indices = @transform_6, window_bounds = array<i64: 16, 128>}]} {
    %c0 = arith.constant 0 : index
    %c0_0 = arith.constant 0 : index
    %0 = vector.load %arg1[%c0, %c0_0] : memref<16x152xbf16, #tpu.memory_space<vmem>>, vector<16x152xbf16>
    %c0_1 = arith.constant 0 : index
    %c0_2 = arith.constant 0 : index
    %1 = vector.load %arg3[%c0_1, %c0_2] : memref<152x128xbf16, #tpu.memory_space<vmem>>, vector<152x128xbf16>
    %cst = arith.constant dense<0.000000e+00> : vector<16x128xf32>
    %2 = tpu.matmul %0, %1, %cst {dimension_numbers = #tpu.dot_dimension_numbers<[1], [0], [0], [1], [0, 0, 1, 1], [], []>} : vector<16x152xbf16>, vector<152x128xbf16>, vector<16x128xf32> -> vector<16x128xf32>
    %c0_3 = arith.constant 0 : index
    %c0_4 = arith.constant 0 : index
    %3 = vector.load %arg4[%c0_3, %c0_4] : memref<152x128xbf16, #tpu.memory_space<vmem>>, vector<152x128xbf16>
    %cst_5 = arith.constant dense<0.000000e+00> : vector<16x128xf32>
    %4 = tpu.matmul %0, %3, %cst_5 {dimension_numbers = #tpu.dot_dimension_numbers<[1], [0], [0], [1], [0, 0, 1, 1], [], []>} : vector<16x152xbf16>, vector<152x128xbf16>, vector<16x128xf32> -> vector<16x128xf32>
    %5 = arith.maximumf %2, %4 : vector<16x128xf32>
    %c0_6 = arith.constant 0 : index
    %c0_7 = arith.constant 0 : index
    %6 = vector.load %arg5[%c0_6, %c0_7] : memref<152x128xbf16, #tpu.memory_space<vmem>>, vector<152x128xbf16>
    %cst_8 = arith.constant dense<0.000000e+00> : vector<16x128xf32>
    %7 = tpu.matmul %0, %6, %cst_8 {dimension_numbers = #tpu.dot_dimension_numbers<[1], [0], [0], [1], [0, 0, 1, 1], [], []>} : vector<16x152xbf16>, vector<152x128xbf16>, vector<16x128xf32> -> vector<16x128xf32>
    %8 = arith.maximumf %5, %7 : vector<16x128xf32>
    %c0_9 = arith.constant 0 : index
    %c0_10 = arith.constant 0 : index
    %9 = vector.load %arg6[%c0_9, %c0_10] : memref<152x128xbf16, #tpu.memory_space<vmem>>, vector<152x128xbf16>
    %cst_11 = arith.constant dense<0.000000e+00> : vector<16x128xf32>
    %10 = tpu.matmul %0, %9, %cst_11 {dimension_numbers = #tpu.dot_dimension_numbers<[1], [0], [0], [1], [0, 0, 1, 1], [], []>} : vector<16x152xbf16>, vector<152x128xbf16>, vector<16x128xf32> -> vector<16x128xf32>
    %11 = arith.maximumf %8, %10 : vector<16x128xf32>
    %c0_12 = arith.constant 0 : index
    %c0_13 = arith.constant 0 : index
    %12 = vector.load %arg2[%c0_12, %c0_13] : memref<16x1xf32, #tpu.memory_space<vmem>>, vector<16x1xf32>
    %13 = vector.broadcast %12 : vector<16x1xf32> to vector<16x128xf32>
    %14 = arith.addf %11, %13 : vector<16x128xf32>
    %cst_14 = arith.constant 0.000000e+00 : f32
    %15 = vector.broadcast %cst_14 : f32 to vector<16x128xf32>
    %16 = arith.maximumf %14, %15 : vector<16x128xf32>
    %c0_15 = arith.constant 0 : index
    %c0_16 = arith.constant 0 : index
    %17 = vector.load %arg7[%c0_15, %c0_16] : memref<16x128xf32, #tpu.memory_space<vmem>>, vector<16x128xf32>
    tpu.vector_store %arg7[%c0_15, %c0_16], %16 {strides = array<i32>} : memref<16x128xf32, #tpu.memory_space<vmem>>, vector<16x128xf32>,
    return
  }
  func.func @transform_0(%arg0: i32) -> (i32, i32) {
    %c0_i32 = arith.constant 0 : i32
    %c0_i32_0 = arith.constant 0 : i32
    %c0_i32_1 = arith.constant 0 : i32
    return %c0_i32, %c0_i32_0 : i32, i32
  }
  func.func @transform_1(%arg0: i32) -> (i32, i32) {
    %c0_i32 = arith.constant 0 : i32
    %c0_i32_0 = arith.constant 0 : i32
    %c0_i32_1 = arith.constant 0 : i32
    return %c0_i32, %c0_i32_0 : i32, i32
  }
  func.func @transform_2(%arg0: i32) -> (i32, i32) {
    %c0_i32 = arith.constant 0 : i32
    %c0_i32_0 = arith.constant 0 : i32
    return %c0_i32, %arg0 : i32, i32
  }
  func.func @transform_3(%arg0: i32) -> (i32, i32) {
    %c0_i32 = arith.constant 0 : i32
    %c0_i32_0 = arith.constant 0 : i32
    return %c0_i32, %arg0 : i32, i32
  }
  func.func @transform_4(%arg0: i32) -> (i32, i32) {
    %c0_i32 = arith.constant 0 : i32
    %c0_i32_0 = arith.constant 0 : i32
    return %c0_i32, %arg0 : i32, i32
  }
  func.func @transform_5(%arg0: i32) -> (i32, i32) {
    %c0_i32 = arith.constant 0 : i32
    %c0_i32_0 = arith.constant 0 : i32
    return %c0_i32, %arg0 : i32, i32
  }
  func.func @transform_6(%arg0: i32) -> (i32, i32) {
    %c0_i32 = arith.constant 0 : i32
    %c0_i32_0 = arith.constant 0 : i32
    return %c0_i32, %arg0 : i32, i32
  }
}

module attributes {stable_mosaic.version = 11 : i64} {
  func.func @_fc3_kernel(%arg0: i32, %arg1: memref<8x256xbf16, #tpu.memory_space<vmem>>, %arg2: memref<256x128xbf16, #tpu.memory_space<vmem>>, %arg3: memref<1x128xf32, #tpu.memory_space<vmem>>, %arg4: memref<128x128xbf16, #tpu.memory_space<vmem>>, %arg5: memref<1x128xf32, #tpu.memory_space<vmem>>, %arg6: memref<128x128xbf16, #tpu.memory_space<vmem>>, %arg7: memref<1x128xf32, #tpu.memory_space<vmem>>, %arg8: memref<8x128xf32, #tpu.memory_space<vmem>>) attributes {dimension_semantics = [#tpu.dimension_semantics<parallel>], iteration_bounds = array<i64: 1>, scalar_prefetch = 0 : i64, scratch_operands = 0 : i64, tpu.core_type = #tpu.core_type<tc>, window_params = [{transform_indices = @transform_0, window_bounds = array<i64: 8, 256>}, {pipeline_mode = #tpu.pipeline_mode<synchronous>, transform_indices = @transform_1, window_bounds = array<i64: 256, 128>}, {pipeline_mode = #tpu.pipeline_mode<synchronous>, transform_indices = @transform_2, window_bounds = array<i64: 1, 128>}, {pipeline_mode = #tpu.pipeline_mode<synchronous>, transform_indices = @transform_3, window_bounds = array<i64: 128, 128>}, {pipeline_mode = #tpu.pipeline_mode<synchronous>, transform_indices = @transform_4, window_bounds = array<i64: 1, 128>}, {pipeline_mode = #tpu.pipeline_mode<synchronous>, transform_indices = @transform_5, window_bounds = array<i64: 128, 128>}, {pipeline_mode = #tpu.pipeline_mode<synchronous>, transform_indices = @transform_6, window_bounds = array<i64: 1, 128>}, {transform_indices = @transform_7, window_bounds = array<i64: 8, 128>}]} {
    %c0 = arith.constant 0 : index
    %c0_0 = arith.constant 0 : index
    %0 = vector.load %arg1[%c0, %c0_0] : memref<8x256xbf16, #tpu.memory_space<vmem>>, vector<8x256xbf16>
    %c0_1 = arith.constant 0 : index
    %c0_2 = arith.constant 0 : index
    %1 = vector.load %arg2[%c0_1, %c0_2] : memref<256x128xbf16, #tpu.memory_space<vmem>>, vector<256x128xbf16>
    %cst = arith.constant dense<0.000000e+00> : vector<8x128xf32>
    %2 = tpu.matmul %0, %1, %cst {dimension_numbers = #tpu.dot_dimension_numbers<[1], [0], [0], [1], [0, 0, 1, 1], [], []>} : vector<8x256xbf16>, vector<256x128xbf16>, vector<8x128xf32> -> vector<8x128xf32>
    %c0_3 = arith.constant 0 : index
    %c0_4 = arith.constant 0 : index
    %3 = vector.load %arg3[%c0_3, %c0_4] : memref<1x128xf32, #tpu.memory_space<vmem>>, vector<1x128xf32>
    %4 = vector.broadcast %3 : vector<1x128xf32> to vector<8x128xf32>
    %5 = arith.addf %2, %4 : vector<8x128xf32>
    %cst_5 = arith.constant 0.000000e+00 : f32
    %6 = vector.broadcast %cst_5 : f32 to vector<8x128xf32>
    %7 = arith.maximumf %5, %6 : vector<8x128xf32>
    %8 = arith.truncf %7 : vector<8x128xf32> to vector<8x128xbf16>
    %c0_6 = arith.constant 0 : index
    %c0_7 = arith.constant 0 : index
    %9 = vector.load %arg4[%c0_6, %c0_7] : memref<128x128xbf16, #tpu.memory_space<vmem>>, vector<128x128xbf16>
    %cst_8 = arith.constant dense<0.000000e+00> : vector<8x128xf32>
    %10 = tpu.matmul %8, %9, %cst_8 {dimension_numbers = #tpu.dot_dimension_numbers<[1], [0], [0], [1], [0, 0, 1, 1], [], []>} : vector<8x128xbf16>, vector<128x128xbf16>, vector<8x128xf32> -> vector<8x128xf32>
    %c0_9 = arith.constant 0 : index
    %c0_10 = arith.constant 0 : index
    %11 = vector.load %arg5[%c0_9, %c0_10] : memref<1x128xf32, #tpu.memory_space<vmem>>, vector<1x128xf32>
    %12 = vector.broadcast %11 : vector<1x128xf32> to vector<8x128xf32>
    %13 = arith.addf %10, %12 : vector<8x128xf32>
    %cst_11 = arith.constant 0.000000e+00 : f32
    %14 = vector.broadcast %cst_11 : f32 to vector<8x128xf32>
    %15 = arith.maximumf %13, %14 : vector<8x128xf32>
    %16 = arith.truncf %15 : vector<8x128xf32> to vector<8x128xbf16>
    %c0_12 = arith.constant 0 : index
    %c0_13 = arith.constant 0 : index
    %17 = vector.load %arg6[%c0_12, %c0_13] : memref<128x128xbf16, #tpu.memory_space<vmem>>, vector<128x128xbf16>
    %cst_14 = arith.constant dense<0.000000e+00> : vector<8x128xf32>
    %18 = tpu.matmul %16, %17, %cst_14 {dimension_numbers = #tpu.dot_dimension_numbers<[1], [0], [0], [1], [0, 0, 1, 1], [], []>} : vector<8x128xbf16>, vector<128x128xbf16>, vector<8x128xf32> -> vector<8x128xf32>
    %c0_15 = arith.constant 0 : index
    %c0_16 = arith.constant 0 : index
    %19 = vector.load %arg7[%c0_15, %c0_16] : memref<1x128xf32, #tpu.memory_space<vmem>>, vector<1x128xf32>
    %20 = vector.broadcast %19 : vector<1x128xf32> to vector<8x128xf32>
    %21 = arith.addf %18, %20 : vector<8x128xf32>
    %cst_17 = arith.constant 0.000000e+00 : f32
    %22 = vector.broadcast %cst_17 : f32 to vector<8x128xf32>
    %23 = arith.maximumf %21, %22 : vector<8x128xf32>
    %c0_18 = arith.constant 0 : index
    %c0_19 = arith.constant 0 : index
    %24 = vector.load %arg8[%c0_18, %c0_19] : memref<8x128xf32, #tpu.memory_space<vmem>>, vector<8x128xf32>
    tpu.vector_store %arg8[%c0_18, %c0_19], %23 {strides = array<i32>} : memref<8x128xf32, #tpu.memory_space<vmem>>, vector<8x128xf32>,
    return
  }
  func.func @transform_0(%arg0: i32) -> (i32, i32) {
    %c0_i32 = arith.constant 0 : i32
    %c0_i32_0 = arith.constant 0 : i32
    return %arg0, %c0_i32 : i32, i32
  }
  func.func @transform_1(%arg0: i32) -> (i32, i32) {
    %c0_i32 = arith.constant 0 : i32
    %c0_i32_0 = arith.constant 0 : i32
    %c0_i32_1 = arith.constant 0 : i32
    return %c0_i32, %c0_i32_0 : i32, i32
  }
  func.func @transform_2(%arg0: i32) -> (i32, i32) {
    %c0_i32 = arith.constant 0 : i32
    %c0_i32_0 = arith.constant 0 : i32
    %c0_i32_1 = arith.constant 0 : i32
    return %c0_i32, %c0_i32_0 : i32, i32
  }
  func.func @transform_3(%arg0: i32) -> (i32, i32) {
    %c0_i32 = arith.constant 0 : i32
    %c0_i32_0 = arith.constant 0 : i32
    %c0_i32_1 = arith.constant 0 : i32
    return %c0_i32, %c0_i32_0 : i32, i32
  }
  func.func @transform_4(%arg0: i32) -> (i32, i32) {
    %c0_i32 = arith.constant 0 : i32
    %c0_i32_0 = arith.constant 0 : i32
    %c0_i32_1 = arith.constant 0 : i32
    return %c0_i32, %c0_i32_0 : i32, i32
  }
  func.func @transform_5(%arg0: i32) -> (i32, i32) {
    %c0_i32 = arith.constant 0 : i32
    %c0_i32_0 = arith.constant 0 : i32
    %c0_i32_1 = arith.constant 0 : i32
    return %c0_i32, %c0_i32_0 : i32, i32
  }
  func.func @transform_6(%arg0: i32) -> (i32, i32) {
    %c0_i32 = arith.constant 0 : i32
    %c0_i32_0 = arith.constant 0 : i32
    %c0_i32_1 = arith.constant 0 : i32
    return %c0_i32, %c0_i32_0 : i32, i32
  }
  func.func @transform_7(%arg0: i32) -> (i32, i32) {
    %c0_i32 = arith.constant 0 : i32
    %c0_i32_0 = arith.constant 0 : i32
    return %arg0, %c0_i32 : i32, i32
  }
}

</mosaic_0001>

<llo_original>
// kernel: lenet5_forward.3
$region0: #{lenet5_forward.3}
  #allocation0 [shape = 'u32[]', space=smem, size = 0x4, offset = 0x4, fixed_abs, tag = 'smem constant byte address 0x4 - core index']
  #allocation1 [shape = 'u32[72,128]{1,0:T(1,128)}', space=vmem, size = 0x9000, scoped, tag = 'internal scratch']
  %s0 = inlined_call_operand.vmem [shape: bf16[8,32], index: 0, kind: input, shape index: {}]
  %s1 = inlined_call_operand.vmem [shape: f32[8,1], index: 1, kind: input, shape index: {}]
  %s2 = inlined_call_operand.vmem [shape: bf16[32,512], index: 2, kind: input, shape index: {}]
  %s3 = inlined_call_operand.vmem [shape: bf16[32,512], index: 3, kind: input, shape index: {}]
  %s4 = inlined_call_operand.vmem [shape: bf16[32,512], index: 4, kind: input, shape index: {}]
  %s5 = inlined_call_operand.vmem [shape: bf16[32,512], index: 5, kind: input, shape index: {}]
  %s6 = inlined_call_operand.vmem [shape: f32[8,512], index: 6, kind: output, shape index: {}]
  %s7 = sld [smem:[#allocation0]]
  $region209: #{lenet5_forward.3} parent=0
    _
  %s9 = ssub.s32 1, %s7
  %s10 = scalar_select 0, %s9, %s7
  $region1: #{lenet5_forward.3} parent=0
    #allocation2 [shape = 'u8[32768]{0}', space=vmem, size = 0x8000, scoped, tag = 'input window, operand 2']
    #allocation3 [shape = 'u8[32768]{0}', space=vmem, size = 0x8000, scoped, tag = 'input window, operand 3']
    #allocation4 [shape = 'u8[32768]{0}', space=vmem, size = 0x8000, scoped, tag = 'input window, operand 4']
    #allocation5 [shape = 'u8[32768]{0}', space=vmem, size = 0x8000, scoped, tag = 'input window, operand 5']
    loop: start=0, step=1, limit=4
    $region2: #{lenet5_forward.3} parent=1 // loop_pre_header
      _
    $region3: #{lenet5_forward.3} parent=1 // loop_header
      %s12 = sphi 0, %s16
      %p13 = scmp.ge.s32.totalorder %s12, 4
      %s20 = sphi 0, %s20
      %s22 = sphi 0, %s20
      %s23 = sphi 0, %s22
      %s37 = sphi 0, %s23
      %s41 = sphi 0, %s41
      %s43 = sphi 0, %s41
      %s44 = sphi 0, %s43
      %s58 = sphi 0, %s44
      %s64 = sphi 0, %s66
      %s67 = sphi 0, %s64
      %s68 = sphi 0, %s67
      %s84 = sphi 0, %s68
      %s90 = sphi 0, %s92
      %s93 = sphi 0, %s90
      %s94 = sphi 0, %s93
      %s110 = sphi 0, %s94
      %s116 = sphi 0, %s118
      %s119 = sphi 0, %s116
      %s120 = sphi 0, %s119
      %s136 = sphi 0, %s120
      %s142 = sphi 0, %s144
      %s145 = sphi 0, %s142
      %s146 = sphi 0, %s145
      %s162 = sphi 0, %s146
      %s168 = sphi 0, %s170
      %s171 = sphi 0, %s168
      %s172 = sphi 0, %s171
      %s188 = sphi 0, %s172
    $region4: #{lenet5_forward.3} parent=1 // loop_header_branch
      %15 = sbr.rel (%p13) target = $region8
    $region5: #{lenet5_forward.3} parent=1 // loop_body
      %s17 = ssub.s32 %s12, 1
      %s18 = ssub.s32 %s12, 2
      %s19 = sadd.s32 %s12, 1
      %s21 = sadd.s32 %s20, 1
      %p24 = scmp.eq.s32.totalorder %s12, 1
      %p25 = scmp.ne.s32.totalorder %s20, %s22
      %p26 = scmp.eq.s32.totalorder %s12, 0
      %p27 = por %p25, %p26
      %p28 = scmp.ne.s32.totalorder %s20, %s22
      %p29 = scmp.eq.s32.totalorder %s17, 1
      %p30 = por %p28, %p29
      %p31 = scmp.ne.s32.totalorder %s22, %s23
      %p32 = scmp.eq.s32.totalorder %s17, 0
      %p33 = por %p31, %p32
      %p34 = scmp.ne.s32.totalorder %s22, %s23
      %p35 = scmp.eq.s32.totalorder %s18, 1
      %p36 = por %p34, %p35
      %p38 = scmp.ne.s32.totalorder %s23, %s37
      %p39 = scmp.eq.s32.totalorder %s18, 0
      %p40 = por %p38, %p39
      %s42 = sadd.s32 %s41, 1
      %p45 = scmp.eq.s32.totalorder %s12, 1
      %p46 = scmp.ne.s32.totalorder %s41, %s43
      %p47 = scmp.eq.s32.totalorder %s12, 0
      %p48 = por %p46, %p47
      %p49 = scmp.ne.s32.totalorder %s41, %s43
      %p50 = scmp.eq.s32.totalorder %s17, 1
      %p51 = por %p49, %p50
      %p52 = scmp.ne.s32.totalorder %s43, %s44
      %p53 = scmp.eq.s32.totalorder %s17, 0
      %p54 = por %p52, %p53
      %p55 = scmp.ne.s32.totalorder %s43, %s44
      %p56 = scmp.eq.s32.totalorder %s18, 1
      %p57 = por %p55, %p56
      %p59 = scmp.ne.s32.totalorder %s44, %s58
      %p60 = scmp.eq.s32.totalorder %s18, 0
      %p61 = por %p59, %p60
      %s62 = ssub.s32 %s12, %s19
      %p63 = scmp.eq.s32.totalorder %s62, 0
      %s65 = sadd.s32 %s64, 1
      %s66 = scalar_select %p63, %s64, %s65
      %p69 = pneg %p63
      %p70 = scmp.eq.s32.totalorder %s12, 1
      %p71 = por %p69, %p70
      %p72 = scmp.ne.s32.totalorder %s64, %s67
      %p73 = scmp.eq.s32.totalorder %s12, 0
      %p74 = por %p72, %p73
      %p75 = scmp.ne.s32.totalorder %s64, %s67
      %p76 = scmp.eq.s32.totalorder %s17, 1
      %p77 = por %p75, %p76
      %p78 = scmp.ne.s32.totalorder %s67, %s68
      %p79 = scmp.eq.s32.totalorder %s17, 0
      %p80 = por %p78, %p79
      %p81 = scmp.ne.s32.totalorder %s67, %s68
      %p82 = scmp.eq.s32.totalorder %s18, 1
      %p83 = por %p81, %p82
      %p85 = scmp.ne.s32.totalorder %s68, %s84
      %p86 = scmp.eq.s32.totalorder %s18, 0
      %p87 = por %p85, %p86
      %s88 = ssub.s32 %s12, %s19
      %p89 = scmp.eq.s32.totalorder %s88, 0
      %s91 = sadd.s32 %s90, 1
      %s92 = scalar_select %p89, %s90, %s91
      %p95 = pneg %p89
      %p96 = scmp.eq.s32.totalorder %s12, 1
      %p97 = por %p95, %p96
      %p98 = scmp.ne.s32.totalorder %s90, %s93
      %p99 = scmp.eq.s32.totalorder %s12, 0
      %p100 = por %p98, %p99
      %p101 = scmp.ne.s32.totalorder %s90, %s93
      %p102 = scmp.eq.s32.totalorder %s17, 1
      %p103 = por %p101, %p102
      %p104 = scmp.ne.s32.totalorder %s93, %s94
      %p105 = scmp.eq.s32.totalorder %s17, 0
      %p106 = por %p104, %p105
      %p107 = scmp.ne.s32.totalorder %s93, %s94
      %p108 = scmp.eq.s32.totalorder %s18, 1
      %p109 = por %p107, %p108
      %p111 = scmp.ne.s32.totalorder %s94, %s110
      %p112 = scmp.eq.s32.totalorder %s18, 0
      %p113 = por %p111, %p112
      %s114 = ssub.s32 %s12, %s19
      %p115 = scmp.eq.s32.totalorder %s114, 0
      %s117 = sadd.s32 %s116, 1
      %s118 = scalar_select %p115, %s116, %s117
      %p121 = pneg %p115
      %p122 = scmp.eq.s32.totalorder %s12, 1
      %p123 = por %p121, %p122
      %p124 = scmp.ne.s32.totalorder %s116, %s119
      %p125 = scmp.eq.s32.totalorder %s12, 0
      %p126 = por %p124, %p125
      %p127 = scmp.ne.s32.totalorder %s116, %s119
      %p128 = scmp.eq.s32.totalorder %s17, 1
      %p129 = por %p127, %p128
      %p130 = scmp.ne.s32.totalorder %s119, %s120
      %p131 = scmp.eq.s32.totalorder %s17, 0
      %p132 = por %p130, %p131
      %p133 = scmp.ne.s32.totalorder %s119, %s120
      %p134 = scmp.eq.s32.totalorder %s18, 1
      %p135 = por %p133, %p134
      %p137 = scmp.ne.s32.totalorder %s120, %s136
      %p138 = scmp.eq.s32.totalorder %s18, 0
      %p139 = por %p137, %p138
      %s140 = ssub.s32 %s12, %s19
      %p141 = scmp.eq.s32.totalorder %s140, 0
      %s143 = sadd.s32 %s142, 1
      %s144 = scalar_select %p141, %s142, %s143
      %p147 = pneg %p141
      %p148 = scmp.eq.s32.totalorder %s12, 1
      %p149 = por %p147, %p148
      %p150 = scmp.ne.s32.totalorder %s142, %s145
      %p151 = scmp.eq.s32.totalorder %s12, 0
      %p152 = por %p150, %p151
      %p153 = scmp.ne.s32.totalorder %s142, %s145
      %p154 = scmp.eq.s32.totalorder %s17, 1
      %p155 = por %p153, %p154
      %p156 = scmp.ne.s32.totalorder %s145, %s146
      %p157 = scmp.eq.s32.totalorder %s17, 0
      %p158 = por %p156, %p157
      %p159 = scmp.ne.s32.totalorder %s145, %s146
      %p160 = scmp.eq.s32.totalorder %s18, 1
      %p161 = por %p159, %p160
      %p163 = scmp.ne.s32.totalorder %s146, %s162
      %p164 = scmp.eq.s32.totalorder %s18, 0
      %p165 = por %p163, %p164
      %s166 = ssub.s32 %s12, %s19
      %p167 = scmp.eq.s32.totalorder %s166, 0
      %s169 = sadd.s32 %s168, 1
      %s170 = scalar_select %p167, %s168, %s169
      %p173 = pneg %p167
      %p174 = scmp.eq.s32.totalorder %s12, 1
      %p175 = por %p173, %p174
      %p176 = scmp.ne.s32.totalorder %s168, %s171
      %p177 = scmp.eq.s32.totalorder %s12, 0
      %p178 = por %p176, %p177
      %p179 = scmp.ne.s32.totalorder %s168, %s171
      %p180 = scmp.eq.s32.totalorder %s17, 1
      %p181 = por %p179, %p180
      %p182 = scmp.ne.s32.totalorder %s171, %s172
      %p183 = scmp.eq.s32.totalorder %s17, 0
      %p184 = por %p182, %p183
      %p185 = scmp.ne.s32.totalorder %s171, %s172
      %p186 = scmp.eq.s32.totalorder %s18, 1
      %p187 = por %p185, %p186
      %p189 = scmp.ne.s32.totalorder %s172, %s188
      %p190 = scmp.eq.s32.totalorder %s18, 0
      %p191 = por %p189, %p190
      %p192 = scmp.le.s32.totalorder 1, %s12
      %p193 = scmp.lt.s32.totalorder %s12, 3
      %p194 = pnand %p192, %p193
      %p195 = pneg %p194
      // Predicated region
      $region9: #{lenet5_forward.3} parent=5 // pred_check
        _
      $region10: #{lenet5_forward.3} parent=5 // pred_check_branch
        %197 = sbr.rel (%p194) target = $region12
      $region11: #{lenet5_forward.3} parent=5 // pred_region
        %s198 = ssub.s32 %s12, 1
        // Predicated region
        $region13: #{lenet5_forward.3} parent=11 // pred_check
          %p199 = pneg %p33
        $region14: #{lenet5_forward.3} parent=11 // pred_check_branch
          %201 = sbr.rel (%p199) target = $region16
        $region15: #{lenet5_forward.3} parent=11 // pred_region
          _
        $region16: #{lenet5_forward.3} parent=11 // pred_fallthru
          _
        // Predicated region
        $region17: #{lenet5_forward.3} parent=11 // pred_check
          %p202 = pneg %p54
        $region18: #{lenet5_forward.3} parent=11 // pred_check_branch
          %204 = sbr.rel (%p202) target = $region20
        $region19: #{lenet5_forward.3} parent=11 // pred_region
          _
        $region20: #{lenet5_forward.3} parent=11 // pred_fallthru
          _
      $region12: #{lenet5_forward.3} parent=5 // pred_fallthru
        _
      %p205 = scmp.lt.s32.totalorder %s12, 2
      // Predicated region
      $region21: #{lenet5_forward.3} parent=5 // pred_check
        %p206 = pneg %p205
      $region22: #{lenet5_forward.3} parent=5 // pred_check_branch
        %208 = sbr.rel (%p206) target = $region24
      $region23: #{lenet5_forward.3} parent=5 // pred_region
        // Predicated region
        $region25: #{lenet5_forward.3} parent=23 // pred_check
          %p209 = pneg %p74
        $region26: #{lenet5_forward.3} parent=23 // pred_check_branch
          %211 = sbr.rel (%p209) target = $region28
        $region27: #{lenet5_forward.3} parent=23 // pred_region
          %s212 = sand.u32 %s64, 1
          %s213 = sand.u32 %s64, 1
          %s214 = smul.addr %s213, 32
          %s215 = scalar_lea.vmem [#allocation2], %s214
          %s216 = smul.u32 2, %s12
          %s217 = smul.addr %s216, 4
          %s218 = scalar_lea.vmem %s2, %s217
          // Predicated region
          $region29: #{lenet5_forward.3} parent=27 // pred_check
            _
          $region30: #{lenet5_forward.3} parent=27 // pred_check_branch
            %220 = sbr.rel (0) target = $region32
          $region31: #{lenet5_forward.3} parent=27 // pred_region
            // Predicated region
            $region33: #{lenet5_forward.3} parent=31 // pred_check
              _
            $region34: #{lenet5_forward.3} parent=31 // pred_check_branch
              %222 = sbr.rel (0) target = $region36
            $region35: #{lenet5_forward.3} parent=31 // pred_region
              // Predicated region
              $region48: #{lenet5_forward.3} parent=35 // pred_check
                _
              $region49: #{lenet5_forward.3} parent=35 // pred_check_branch
                %244 = sbr.rel (0) target = $region51
              $region50: #{lenet5_forward.3} parent=35 // pred_region
                loop: start=0, step=1, limit=1
                $region52: #{lenet5_forward.3} parent=50 // loop_pre_header
                  _
                $region53: #{lenet5_forward.3} parent=50 // loop_header
                  %s246 = sphi 0, %s250
                  %p247 = scmp.ge.s32.totalorder %s246, 1
                  %s251 = sphi %s218, %s218
                  %s252 = sphi %s215, %s215
                $region54: #{lenet5_forward.3} parent=50 // loop_header_branch
                  %249 = sbr.rel (%p247) target = $region58
                $region55: #{lenet5_forward.3} parent=50 // loop_body
                  %v253 = vld [vmem:[%s251] sm:$0xff]
                  %254 = vst [vmem:[%s252] sm:$0xff] %v253
                  %v255 = vld [vmem:[%s251 + $0x10] sm:$0xff]
                  %256 = vst [vmem:[%s252 + $0x8] sm:$0xff] %v255
                  %v257 = vld [vmem:[%s251 + $0x20] sm:$0xff]
                  %258 = vst [vmem:[%s252 + $0x10] sm:$0xff] %v257
                  %v259 = vld [vmem:[%s251 + $0x30] sm:$0xff]
                  %260 = vst [vmem:[%s252 + $0x18] sm:$0xff] %v259
                $region56: #{lenet5_forward.3} parent=50 // loop_footer
                  %s250 = sadd.s32 1, %s246
                $region57: #{lenet5_forward.3} parent=50 // loop_footer_branch
                  %245 = sbr.rel target = $region53
                $region58: #{lenet5_forward.3} parent=50 // loop_exit
                  _
              $region51: #{lenet5_forward.3} parent=35 // pred_fallthru
                _
              // Predicated region
              $region59: #{lenet5_forward.3} parent=35 // pred_check
                _
              $region60: #{lenet5_forward.3} parent=35 // pred_check_branch
                %262 = sbr.rel target = $region62
              $region61: #{lenet5_forward.3} parent=35 // pred_region
                _
              $region62: #{lenet5_forward.3} parent=35 // pred_fallthru
                _
            $region36: #{lenet5_forward.3} parent=31 // pred_fallthru
              _
            // Predicated region
            $region37: #{lenet5_forward.3} parent=31 // pred_check
              _
            $region38: #{lenet5_forward.3} parent=31 // pred_check_branch
              %224 = sbr.rel target = $region40
            $region39: #{lenet5_forward.3} parent=31 // pred_region
              %s226 = ssub.s32 256, 1
              loop: start=0, step=1, limit=1
              $region41: #{lenet5_forward.3} parent=39 // loop_pre_header
                _
              $region42: #{lenet5_forward.3} parent=39 // loop_header
                %s228 = sphi 0, %s232
                %p229 = scmp.ge.s32.totalorder %s228, 1
                %s233 = sphi %s218, %s218
                %s234 = sphi %s215, %s215
              $region43: #{lenet5_forward.3} parent=39 // loop_header_branch
                %231 = sbr.rel (%p229) target = $region47
              $region44: #{lenet5_forward.3} parent=39 // loop_body
                %v235 = vld [vmem:[%s233] sm:%s226]
                %236 = vst [vmem:[%s234] sm:%s226] %v235
                %v237 = vld [vmem:[%s233 + $0x10] sm:%s226]
                %238 = vst [vmem:[%s234 + $0x8] sm:%s226] %v237
                %v239 = vld [vmem:[%s233 + $0x20] sm:%s226]
                %240 = vst [vmem:[%s234 + $0x10] sm:%s226] %v239
                %v241 = vld [vmem:[%s233 + $0x30] sm:%s226]
                %242 = vst [vmem:[%s234 + $0x18] sm:%s226] %v241
              $region45: #{lenet5_forward.3} parent=39 // loop_footer
                %s232 = sadd.s32 1, %s228
              $region46: #{lenet5_forward.3} parent=39 // loop_footer_branch
                %227 = sbr.rel target = $region42
              $region47: #{lenet5_forward.3} parent=39 // loop_exit
                _
            $region40: #{lenet5_forward.3} parent=31 // pred_fallthru
              _
          $region32: #{lenet5_forward.3} parent=27 // pred_fallthru
            _
          %263 = vnop
        $region28: #{lenet5_forward.3} parent=23 // pred_fallthru
          _
        // Predicated region
        $region63: #{lenet5_forward.3} parent=23 // pred_check
          %p264 = pneg %p100
        $region64: #{lenet5_forward.3} parent=23 // pred_check_branch
          %266 = sbr.rel (%p264) target = $region66
        $region65: #{lenet5_forward.3} parent=23 // pred_region
          %s267 = sand.u32 %s90, 1
          %s268 = sand.u32 %s90, 1
          %s269 = smul.addr %s268, 32
          %s270 = scalar_lea.vmem [#allocation3], %s269
          %s271 = smul.u32 2, %s12
          %s272 = smul.addr %s271, 4
          %s273 = scalar_lea.vmem %s3, %s272
          // Predicated region
          $region67: #{lenet5_forward.3} parent=65 // pred_check
            _
          $region68: #{lenet5_forward.3} parent=65 // pred_check_branch
            %275 = sbr.rel (0) target = $region70
          $region69: #{lenet5_forward.3} parent=65 // pred_region
            // Predicated region
            $region71: #{lenet5_forward.3} parent=69 // pred_check
              _
            $region72: #{lenet5_forward.3} parent=69 // pred_check_branch
              %277 = sbr.rel (0) target = $region74
            $region73: #{lenet5_forward.3} parent=69 // pred_region
              // Predicated region
              $region86: #{lenet5_forward.3} parent=73 // pred_check
                _
              $region87: #{lenet5_forward.3} parent=73 // pred_check_branch
                %299 = sbr.rel (0) target = $region89
              $region88: #{lenet5_forward.3} parent=73 // pred_region
                loop: start=0, step=1, limit=1
                $region90: #{lenet5_forward.3} parent=88 // loop_pre_header
                  _
                $region91: #{lenet5_forward.3} parent=88 // loop_header
                  %s301 = sphi 0, %s305
                  %p302 = scmp.ge.s32.totalorder %s301, 1
                  %s306 = sphi %s273, %s273
                  %s307 = sphi %s270, %s270
                $region92: #{lenet5_forward.3} parent=88 // loop_header_branch
                  %304 = sbr.rel (%p302) target = $region96
                $region93: #{lenet5_forward.3} parent=88 // loop_body
                  %v308 = vld [vmem:[%s306] sm:$0xff]
                  %309 = vst [vmem:[%s307] sm:$0xff] %v308
                  %v310 = vld [vmem:[%s306 + $0x10] sm:$0xff]
                  %311 = vst [vmem:[%s307 + $0x8] sm:$0xff] %v310
                  %v312 = vld [vmem:[%s306 + $0x20] sm:$0xff]
                  %313 = vst [vmem:[%s307 + $0x10] sm:$0xff] %v312
                  %v314 = vld [vmem:[%s306 + $0x30] sm:$0xff]
                  %315 = vst [vmem:[%s307 + $0x18] sm:$0xff] %v314
                $region94: #{lenet5_forward.3} parent=88 // loop_footer
                  %s305 = sadd.s32 1, %s301
                $region95: #{lenet5_forward.3} parent=88 // loop_footer_branch
                  %300 = sbr.rel target = $region91
                $region96: #{lenet5_forward.3} parent=88 // loop_exit
                  _
              $region89: #{lenet5_forward.3} parent=73 // pred_fallthru
                _
              // Predicated region
              $region97: #{lenet5_forward.3} parent=73 // pred_check
                _
              $region98: #{lenet5_forward.3} parent=73 // pred_check_branch
                %317 = sbr.rel target = $region100
              $region99: #{lenet5_forward.3} parent=73 // pred_region
                _
              $region100: #{lenet5_forward.3} parent=73 // pred_fallthru
                _
            $region74: #{lenet5_forward.3} parent=69 // pred_fallthru
              _
            // Predicated region
            $region75: #{lenet5_forward.3} parent=69 // pred_check
              _
            $region76: #{lenet5_forward.3} parent=69 // pred_check_branch
              %279 = sbr.rel target = $region78
            $region77: #{lenet5_forward.3} parent=69 // pred_region
              %s281 = ssub.s32 256, 1
              loop: start=0, step=1, limit=1
              $region79: #{lenet5_forward.3} parent=77 // loop_pre_header
                _
              $region80: #{lenet5_forward.3} parent=77 // loop_header
                %s283 = sphi 0, %s287
                %p284 = scmp.ge.s32.totalorder %s283, 1
                %s288 = sphi %s273, %s273
                %s289 = sphi %s270, %s270
              $region81: #{lenet5_forward.3} parent=77 // loop_header_branch
                %286 = sbr.rel (%p284) target = $region85
              $region82: #{lenet5_forward.3} parent=77 // loop_body
                %v290 = vld [vmem:[%s288] sm:%s281]
                %291 = vst [vmem:[%s289] sm:%s281] %v290
                %v292 = vld [vmem:[%s288 + $0x10] sm:%s281]
                %293 = vst [vmem:[%s289 + $0x8] sm:%s281] %v292
                %v294 = vld [vmem:[%s288 + $0x20] sm:%s281]
                %295 = vst [vmem:[%s289 + $0x10] sm:%s281] %v294
                %v296 = vld [vmem:[%s288 + $0x30] sm:%s281]
                %297 = vst [vmem:[%s289 + $0x18] sm:%s281] %v296
              $region83: #{lenet5_forward.3} parent=77 // loop_footer
                %s287 = sadd.s32 1, %s283
              $region84: #{lenet5_forward.3} parent=77 // loop_footer_branch
                %282 = sbr.rel target = $region80
              $region85: #{lenet5_forward.3} parent=77 // loop_exit
                _
            $region78: #{lenet5_forward.3} parent=69 // pred_fallthru
              _
          $region70: #{lenet5_forward.3} parent=65 // pred_fallthru
            _
          %318 = vnop
        $region66: #{lenet5_forward.3} parent=23 // pred_fallthru
          _
        // Predicated region
        $region101: #{lenet5_forward.3} parent=23 // pred_check
          %p319 = pneg %p126
        $region102: #{lenet5_forward.3} parent=23 // pred_check_branch
          %321 = sbr.rel (%p319) target = $region104
        $region103: #{lenet5_forward.3} parent=23 // pred_region
          %s322 = sand.u32 %s116, 1
          %s323 = sand.u32 %s116, 1
          %s324 = smul.addr %s323, 32
          %s325 = scalar_lea.vmem [#allocation4], %s324
          %s326 = smul.u32 2, %s12
          %s327 = smul.addr %s326, 4
          %s328 = scalar_lea.vmem %s4, %s327
          // Predicated region
          $region105: #{lenet5_forward.3} parent=103 // pred_check
            _
          $region106: #{lenet5_forward.3} parent=103 // pred_check_branch
            %330 = sbr.rel (0) target = $region108
          $region107: #{lenet5_forward.3} parent=103 // pred_region
            // Predicated region
            $region109: #{lenet5_forward.3} parent=107 // pred_check
              _
            $region110: #{lenet5_forward.3} parent=107 // pred_check_branch
              %332 = sbr.rel (0) target = $region112
            $region111: #{lenet5_forward.3} parent=107 // pred_region
              // Predicated region
              $region124: #{lenet5_forward.3} parent=111 // pred_check
                _
              $region125: #{lenet5_forward.3} parent=111 // pred_check_branch
                %354 = sbr.rel (0) target = $region127
              $region126: #{lenet5_forward.3} parent=111 // pred_region
                loop: start=0, step=1, limit=1
                $region128: #{lenet5_forward.3} parent=126 // loop_pre_header
                  _
                $region129: #{lenet5_forward.3} parent=126 // loop_header
                  %s356 = sphi 0, %s360
                  %p357 = scmp.ge.s32.totalorder %s356, 1
                  %s361 = sphi %s328, %s328
                  %s362 = sphi %s325, %s325
                $region130: #{lenet5_forward.3} parent=126 // loop_header_branch
                  %359 = sbr.rel (%p357) target = $region134
                $region131: #{lenet5_forward.3} parent=126 // loop_body
                  %v363 = vld [vmem:[%s361] sm:$0xff]
                  %364 = vst [vmem:[%s362] sm:$0xff] %v363
                  %v365 = vld [vmem:[%s361 + $0x10] sm:$0xff]
                  %366 = vst [vmem:[%s362 + $0x8] sm:$0xff] %v365
                  %v367 = vld [vmem:[%s361 + $0x20] sm:$0xff]
                  %368 = vst [vmem:[%s362 + $0x10] sm:$0xff] %v367
                  %v369 = vld [vmem:[%s361 + $0x30] sm:$0xff]
                  %370 = vst [vmem:[%s362 + $0x18] sm:$0xff] %v369
                $region132: #{lenet5_forward.3} parent=126 // loop_footer
                  %s360 = sadd.s32 1, %s356
                $region133: #{lenet5_forward.3} parent=126 // loop_footer_branch
                  %355 = sbr.rel target = $region129
                $region134: #{lenet5_forward.3} parent=126 // loop_exit
                  _
              $region127: #{lenet5_forward.3} parent=111 // pred_fallthru
                _
              // Predicated region
              $region135: #{lenet5_forward.3} parent=111 // pred_check
                _
              $region136: #{lenet5_forward.3} parent=111 // pred_check_branch
                %372 = sbr.rel target = $region138
              $region137: #{lenet5_forward.3} parent=111 // pred_region
                _
              $region138: #{lenet5_forward.3} parent=111 // pred_fallthru
                _
            $region112: #{lenet5_forward.3} parent=107 // pred_fallthru
              _
            // Predicated region
            $region113: #{lenet5_forward.3} parent=107 // pred_check
              _
            $region114: #{lenet5_forward.3} parent=107 // pred_check_branch
              %334 = sbr.rel target = $region116
            $region115: #{lenet5_forward.3} parent=107 // pred_region
              %s336 = ssub.s32 256, 1
              loop: start=0, step=1, limit=1
              $region117: #{lenet5_forward.3} parent=115 // loop_pre_header
                _
              $region118: #{lenet5_forward.3} parent=115 // loop_header
                %s338 = sphi 0, %s342
                %p339 = scmp.ge.s32.totalorder %s338, 1
                %s343 = sphi %s328, %s328
                %s344 = sphi %s325, %s325
              $region119: #{lenet5_forward.3} parent=115 // loop_header_branch
                %341 = sbr.rel (%p339) target = $region123
              $region120: #{lenet5_forward.3} parent=115 // loop_body
                %v345 = vld [vmem:[%s343] sm:%s336]
                %346 = vst [vmem:[%s344] sm:%s336] %v345
                %v347 = vld [vmem:[%s343 + $0x10] sm:%s336]
                %348 = vst [vmem:[%s344 + $0x8] sm:%s336] %v347
                %v349 = vld [vmem:[%s343 + $0x20] sm:%s336]
                %350 = vst [vmem:[%s344 + $0x10] sm:%s336] %v349
                %v351 = vld [vmem:[%s343 + $0x30] sm:%s336]
                %352 = vst [vmem:[%s344 + $0x18] sm:%s336] %v351
              $region121: #{lenet5_forward.3} parent=115 // loop_footer
                %s342 = sadd.s32 1, %s338
              $region122: #{lenet5_forward.3} parent=115 // loop_footer_branch
                %337 = sbr.rel target = $region118
              $region123: #{lenet5_forward.3} parent=115 // loop_exit
                _
            $region116: #{lenet5_forward.3} parent=107 // pred_fallthru
              _
          $region108: #{lenet5_forward.3} parent=103 // pred_fallthru
            _
          %373 = vnop
        $region104: #{lenet5_forward.3} parent=23 // pred_fallthru
          _
        // Predicated region
        $region139: #{lenet5_forward.3} parent=23 // pred_check
          %p374 = pneg %p152
        $region140: #{lenet5_forward.3} parent=23 // pred_check_branch
          %376 = sbr.rel (%p374) target = $region142
        $region141: #{lenet5_forward.3} parent=23 // pred_region
          %s377 = sand.u32 %s142, 1
          %s378 = sand.u32 %s142, 1
          %s379 = smul.addr %s378, 32
          %s380 = scalar_lea.vmem [#allocation5], %s379
          %s381 = smul.u32 2, %s12
          %s382 = smul.addr %s381, 4
          %s383 = scalar_lea.vmem %s5, %s382
          // Predicated region
          $region143: #{lenet5_forward.3} parent=141 // pred_check
            _
          $region144: #{lenet5_forward.3} parent=141 // pred_check_branch
            %385 = sbr.rel (0) target = $region146
          $region145: #{lenet5_forward.3} parent=141 // pred_region
            // Predicated region
            $region147: #{lenet5_forward.3} parent=145 // pred_check
              _
            $region148: #{lenet5_forward.3} parent=145 // pred_check_branch
              %387 = sbr.rel (0) target = $region150
            $region149: #{lenet5_forward.3} parent=145 // pred_region
              // Predicated region
              $region162: #{lenet5_forward.3} parent=149 // pred_check
                _
              $region163: #{lenet5_forward.3} parent=149 // pred_check_branch
                %409 = sbr.rel (0) target = $region165
              $region164: #{lenet5_forward.3} parent=149 // pred_region
                loop: start=0, step=1, limit=1
                $region166: #{lenet5_forward.3} parent=164 // loop_pre_header
                  _
                $region167: #{lenet5_forward.3} parent=164 // loop_header
                  %s411 = sphi 0, %s415
                  %p412 = scmp.ge.s32.totalorder %s411, 1
                  %s416 = sphi %s383, %s383
                  %s417 = sphi %s380, %s380
                $region168: #{lenet5_forward.3} parent=164 // loop_header_branch
                  %414 = sbr.rel (%p412) target = $region172
                $region169: #{lenet5_forward.3} parent=164 // loop_body
                  %v418 = vld [vmem:[%s416] sm:$0xff]
                  %419 = vst [vmem:[%s417] sm:$0xff] %v418
                  %v420 = vld [vmem:[%s416 + $0x10] sm:$0xff]
                  %421 = vst [vmem:[%s417 + $0x8] sm:$0xff] %v420
                  %v422 = vld [vmem:[%s416 + $0x20] sm:$0xff]
                  %423 = vst [vmem:[%s417 + $0x10] sm:$0xff] %v422
                  %v424 = vld [vmem:[%s416 + $0x30] sm:$0xff]
                  %425 = vst [vmem:[%s417 + $0x18] sm:$0xff] %v424
                $region170: #{lenet5_forward.3} parent=164 // loop_footer
                  %s415 = sadd.s32 1, %s411
                $region171: #{lenet5_forward.3} parent=164 // loop_footer_branch
                  %410 = sbr.rel target = $region167
                $region172: #{lenet5_forward.3} parent=164 // loop_exit
                  _
              $region165: #{lenet5_forward.3} parent=149 // pred_fallthru
                _
              // Predicated region
              $region173: #{lenet5_forward.3} parent=149 // pred_check
                _
              $region174: #{lenet5_forward.3} parent=149 // pred_check_branch
                %427 = sbr.rel target = $region176
              $region175: #{lenet5_forward.3} parent=149 // pred_region
                _
              $region176: #{lenet5_forward.3} parent=149 // pred_fallthru
                _
            $region150: #{lenet5_forward.3} parent=145 // pred_fallthru
              _
            // Predicated region
            $region151: #{lenet5_forward.3} parent=145 // pred_check
              _
            $region152: #{lenet5_forward.3} parent=145 // pred_check_branch
              %389 = sbr.rel target = $region154
            $region153: #{lenet5_forward.3} parent=145 // pred_region
              %s391 = ssub.s32 256, 1
              loop: start=0, step=1, limit=1
              $region155: #{lenet5_forward.3} parent=153 // loop_pre_header
                _
              $region156: #{lenet5_forward.3} parent=153 // loop_header
                %s393 = sphi 0, %s397
                %p394 = scmp.ge.s32.totalorder %s393, 1
                %s398 = sphi %s383, %s383
                %s399 = sphi %s380, %s380
              $region157: #{lenet5_forward.3} parent=153 // loop_header_branch
                %396 = sbr.rel (%p394) target = $region161
              $region158: #{lenet5_forward.3} parent=153 // loop_body
                %v400 = vld [vmem:[%s398] sm:%s391]
                %401 = vst [vmem:[%s399] sm:%s391] %v400
                %v402 = vld [vmem:[%s398 + $0x10] sm:%s391]
                %403 = vst [vmem:[%s399 + $0x8] sm:%s391] %v402
                %v404 = vld [vmem:[%s398 + $0x20] sm:%s391]
                %405 = vst [vmem:[%s399 + $0x10] sm:%s391] %v404
                %v406 = vld [vmem:[%s398 + $0x30] sm:%s391]
                %407 = vst [vmem:[%s399 + $0x18] sm:%s391] %v406
              $region159: #{lenet5_forward.3} parent=153 // loop_footer
                %s397 = sadd.s32 1, %s393
              $region160: #{lenet5_forward.3} parent=153 // loop_footer_branch
                %392 = sbr.rel target = $region156
              $region161: #{lenet5_forward.3} parent=153 // loop_exit
                _
            $region154: #{lenet5_forward.3} parent=145 // pred_fallthru
              _
          $region146: #{lenet5_forward.3} parent=141 // pred_fallthru
            _
          %428 = vnop
        $region142: #{lenet5_forward.3} parent=23 // pred_fallthru
          _
      $region24: #{lenet5_forward.3} parent=5 // pred_fallthru
        _
      %p429 = scmp.le.s32.totalorder 1, %s12
      %p430 = scmp.lt.s32.totalorder %s12, 3
      %p431 = pnand %p429, %p430
      %p432 = pneg %p431
      // Predicated region
      $region177: #{lenet5_forward.3} parent=5 // pred_check
        _
      $region178: #{lenet5_forward.3} parent=5 // pred_check_branch
        %434 = sbr.rel (%p431) target = $region180
      $region179: #{lenet5_forward.3} parent=5 // pred_region
        %s435 = ssub.s32 %s12, 1
        %s436 = sand.u32 %s67, 1
        %s437 = sand.u32 %s67, 1
        %s438 = smul.addr %s437, 32
        %s439 = scalar_lea.vmem [#allocation2], %s438
        // Predicated region
        $region181: #{lenet5_forward.3} parent=179 // pred_check
          %p440 = pneg %p80
        $region182: #{lenet5_forward.3} parent=179 // pred_check_branch
          %442 = sbr.rel (%p440) target = $region184
        $region183: #{lenet5_forward.3} parent=179 // pred_region
          _
        $region184: #{lenet5_forward.3} parent=179 // pred_fallthru
          _
        %s443 = sand.u32 %s93, 1
        %s444 = sand.u32 %s93, 1
        %s445 = smul.addr %s444, 32
        %s446 = scalar_lea.vmem [#allocation3], %s445
        // Predicated region
        $region185: #{lenet5_forward.3} parent=179 // pred_check
          %p447 = pneg %p106
        $region186: #{lenet5_forward.3} parent=179 // pred_check_branch
          %449 = sbr.rel (%p447) target = $region188
        $region187: #{lenet5_forward.3} parent=179 // pred_region
          _
        $region188: #{lenet5_forward.3} parent=179 // pred_fallthru
          _
        %s450 = sand.u32 %s119, 1
        %s451 = sand.u32 %s119, 1
        %s452 = smul.addr %s451, 32
        %s453 = scalar_lea.vmem [#allocation4], %s452
        // Predicated region
        $region189: #{lenet5_forward.3} parent=179 // pred_check
          %p454 = pneg %p132
        $region190: #{lenet5_forward.3} parent=179 // pred_check_branch
          %456 = sbr.rel (%p454) target = $region192
        $region191: #{lenet5_forward.3} parent=179 // pred_region
          _
        $region192: #{lenet5_forward.3} parent=179 // pred_fallthru
          _
        %s457 = sand.u32 %s145, 1
        %s458 = sand.u32 %s145, 1
        %s459 = smul.addr %s458, 32
        %s460 = scalar_lea.vmem [#allocation5], %s459
        // Predicated region
        $region193: #{lenet5_forward.3} parent=179 // pred_check
          %p461 = pneg %p158
        $region194: #{lenet5_forward.3} parent=179 // pred_check_branch
          %463 = sbr.rel (%p461) target = $region196
        $region195: #{lenet5_forward.3} parent=179 // pred_region
          _
        $region196: #{lenet5_forward.3} parent=179 // pred_fallthru
          _
        %p464 = pneg %p33
        %p465 = pneg %p30
        %p466 = pneg %p54
        %p467 = pneg %p51
        %s468 = sand.u32 %s67, 1
        %s469 = sand.u32 %s67, 1
        %s470 = smul.addr %s469, 32
        %s471 = scalar_lea.vmem [#allocation2], %s470
        %p472 = pneg %p80
        %p473 = pneg %p77
        %s474 = sand.u32 %s93, 1
        %s475 = sand.u32 %s93, 1
        %s476 = smul.addr %s475, 32
        %s477 = scalar_lea.vmem [#allocation3], %s476
        %p478 = pneg %p106
        %p479 = pneg %p103
        %s480 = sand.u32 %s119, 1
        %s481 = sand.u32 %s119, 1
        %s482 = smul.addr %s481, 32
        %s483 = scalar_lea.vmem [#allocation4], %s482
        %p484 = pneg %p132
        %p485 = pneg %p129
        %s486 = sand.u32 %s145, 1
        %s487 = sand.u32 %s145, 1
        %s488 = smul.addr %s487, 32
        %s489 = scalar_lea.vmem [#allocation5], %s488
        %p490 = pneg %p158
        %p491 = pneg %p155
        %p492 = pneg %p184
        %p493 = pneg %p181
        %s494 = smul.u32 2, %s17
        %p495 = scmp.lt.s32.totalorder %s494, 3
        %s496 = scalar_select %p495, %s494, 3
        %s497 = smul.addr %s496, 8
        %s498 = scalar_lea.vmem %s6, %s497
        %s499 = smul.u32 2, %s17
        %s500 = smul.u32 2, %s17
        %s501 = smul.u32 2, %s17
        %s502 = smul.u32 2, %s17
        %s503 = smul.u32 2, %s17
        %p504 = scmp.lt.s32.totalorder %s503, 3
        %s505 = scalar_select %p504, %s503, 3
        %s506 = smul.addr %s505, 8
        %s507 = scalar_lea.vmem %s6, %s506
        %s508 = smul.u32 2, %s17
        %v510 = vld [vmem:[%s0] sm:$0xf]
        %v511 = vld [vmem:[%s439] sm:$0xff]
        %v512 = vld [vmem:[%s439 + $0x8] sm:$0xff]
        %v513 = vld [vmem:[%s439 + $0x10] sm:$0xff]
        %v514 = vld [vmem:[%s439 + $0x18] sm:$0xff]
        %v519 = vunpack.c.l.b16 %v511
        %v520 = vunpack.c.h.b16 %v511
        %v521 = vunpack.c.l.b16 %v512
        %v522 = vunpack.c.h.b16 %v512
        %v523 = vunpack.c.l.b16 %v513
        %v524 = vunpack.c.h.b16 %v513
        %v525 = vunpack.c.l.b16 %v514
        %v526 = vunpack.c.h.b16 %v514
        %v527 = vpack.c.b16 %v521, %v519
        %v528 = vpack.c.b16 %v522, %v520
        %v529 = vpack.c.b16 %v525, %v523
        %v530 = vpack.c.b16 %v526, %v524
        %vm535 = vcmask 261120
        %v537 = vsel %vm535, %v510, 0
        %539 = vmatpush.bf16.msra.mxu0 0
        %540 = vmatpush.bf16.msra.mxu0 0
        %541 = vmatpush.bf16.msra.mxu0 0
        %542 = vmatpush.bf16.msra.mxu0 0
        %543 = vmatpush.bf16.msra.mxu0 0
        %544 = vmatpush.bf16.msra.mxu0 0
        %545 = vmatpush.bf16.msra.mxu0 %v529
        %546 = vmatpush.bf16.msra.mxu0 %v527
        %547 = vmatmul.bf16.gmra.mxu0 %v537
        %v548 = vpop.f32.mrf.mxu0
        %v549 = vadd.f32 0.0, %v548
        %v550 = vpop.f32.mrf.mxu0
        %551 = vdwg.mxu0
        %552 = vmatpush.bf16.msra.mxu0 0
        %553 = vmatpush.bf16.msra.mxu0 0
        %554 = vmatpush.bf16.msra.mxu0 0
        %555 = vmatpush.bf16.msra.mxu0 0
        %556 = vmatpush.bf16.msra.mxu0 0
        %557 = vmatpush.bf16.msra.mxu0 0
        %558 = vmatpush.bf16.msra.mxu0 %v530
        %559 = vmatpush.bf16.msra.mxu0 %v528
        %560 = vmatmul.bf16.gmra.mxu0 %v537
        %v561 = vpop.f32.mrf.mxu0
        %v562 = vadd.f32 0.0, %v561
        %v563 = vpop.f32.mrf.mxu0
        %564 = vdwg.mxu0
        %v565 = vld [vmem:[%s446] sm:$0xff]
        %v566 = vld [vmem:[%s446 + $0x8] sm:$0xff]
        %v567 = vld [vmem:[%s446 + $0x10] sm:$0xff]
        %v568 = vld [vmem:[%s446 + $0x18] sm:$0xff]
        %v573 = vunpack.c.l.b16 %v565
        %v574 = vunpack.c.h.b16 %v565
        %v575 = vunpack.c.l.b16 %v566
        %v576 = vunpack.c.h.b16 %v566
        %v577 = vunpack.c.l.b16 %v567
        %v578 = vunpack.c.h.b16 %v567
        %v579 = vunpack.c.l.b16 %v568
        %v580 = vunpack.c.h.b16 %v568
        %v581 = vpack.c.b16 %v575, %v573
        %v582 = vpack.c.b16 %v576, %v574
        %v583 = vpack.c.b16 %v579, %v577
        %v584 = vpack.c.b16 %v580, %v578
        %589 = vmatpush.bf16.msra.mxu0 0
        %590 = vmatpush.bf16.msra.mxu0 0
        %591 = vmatpush.bf16.msra.mxu0 0
        %592 = vmatpush.bf16.msra.mxu0 0
        %593 = vmatpush.bf16.msra.mxu0 0
        %594 = vmatpush.bf16.msra.mxu0 0
        %595 = vmatpush.bf16.msra.mxu0 %v583
        %596 = vmatpush.bf16.msra.mxu0 %v581
        %597 = vmatmul.bf16.gmra.mxu0 %v537
        %v598 = vpop.f32.mrf.mxu0
        %v599 = vadd.f32 0.0, %v598
        %v600 = vpop.f32.mrf.mxu0
        %601 = vdwg.mxu0
        %602 = vmatpush.bf16.msra.mxu0 0
        %603 = vmatpush.bf16.msra.mxu0 0
        %604 = vmatpush.bf16.msra.mxu0 0
        %605 = vmatpush.bf16.msra.mxu0 0
        %606 = vmatpush.bf16.msra.mxu0 0
        %607 = vmatpush.bf16.msra.mxu0 0
        %608 = vmatpush.bf16.msra.mxu0 %v584
        %609 = vmatpush.bf16.msra.mxu0 %v582
        %610 = vmatmul.bf16.gmra.mxu0 %v537
        %v611 = vpop.f32.mrf.mxu0
        %v612 = vadd.f32 0.0, %v611
        %v613 = vpop.f32.mrf.mxu0
        %614 = vdwg.mxu0
        %v615 = vmax.f32 %v549, %v599
        %v616 = vmax.f32 %v562, %v612
        %v617 = vld [vmem:[%s453] sm:$0xff]
        %v618 = vld [vmem:[%s453 + $0x8] sm:$0xff]
        %v619 = vld [vmem:[%s453 + $0x10] sm:$0xff]
        %v620 = vld [vmem:[%s453 + $0x18] sm:$0xff]
        %v625 = vunpack.c.l.b16 %v617
        %v626 = vunpack.c.h.b16 %v617
        %v627 = vunpack.c.l.b16 %v618
        %v628 = vunpack.c.h.b16 %v618
        %v629 = vunpack.c.l.b16 %v619
        %v630 = vunpack.c.h.b16 %v619
        %v631 = vunpack.c.l.b16 %v620
        %v632 = vunpack.c.h.b16 %v620
        %v633 = vpack.c.b16 %v627, %v625
        %v634 = vpack.c.b16 %v628, %v626
        %v635 = vpack.c.b16 %v631, %v629
        %v636 = vpack.c.b16 %v632, %v630
        %641 = vmatpush.bf16.msra.mxu0 0
        %642 = vmatpush.bf16.msra.mxu0 0
        %643 = vmatpush.bf16.msra.mxu0 0
        %644 = vmatpush.bf16.msra.mxu0 0
        %645 = vmatpush.bf16.msra.mxu0 0
        %646 = vmatpush.bf16.msra.mxu0 0
        %647 = vmatpush.bf16.msra.mxu0 %v635
        %648 = vmatpush.bf16.msra.mxu0 %v633
        %649 = vmatmul.bf16.gmra.mxu0 %v537
        %v650 = vpop.f32.mrf.mxu0
        %v651 = vadd.f32 0.0, %v650
        %v652 = vpop.f32.mrf.mxu0
        %653 = vdwg.mxu0
        %654 = vmatpush.bf16.msra.mxu0 0
        %655 = vmatpush.bf16.msra.mxu0 0
        %656 = vmatpush.bf16.msra.mxu0 0
        %657 = vmatpush.bf16.msra.mxu0 0
        %658 = vmatpush.bf16.msra.mxu0 0
        %659 = vmatpush.bf16.msra.mxu0 0
        %660 = vmatpush.bf16.msra.mxu0 %v636
        %661 = vmatpush.bf16.msra.mxu0 %v634
        %662 = vmatmul.bf16.gmra.mxu0 %v537
        %v663 = vpop.f32.mrf.mxu0
        %v664 = vadd.f32 0.0, %v663
        %v665 = vpop.f32.mrf.mxu0
        %666 = vdwg.mxu0
        %v667 = vmax.f32 %v615, %v651
        %v668 = vmax.f32 %v616, %v664
        %v669 = vld [vmem:[%s460] sm:$0xff]
        %v670 = vld [vmem:[%s460 + $0x8] sm:$0xff]
        %v671 = vld [vmem:[%s460 + $0x10] sm:$0xff]
        %v672 = vld [vmem:[%s460 + $0x18] sm:$0xff]
        %v677 = vunpack.c.l.b16 %v669
        %v678 = vunpack.c.h.b16 %v669
        %v679 = vunpack.c.l.b16 %v670
        %v680 = vunpack.c.h.b16 %v670
        %v681 = vunpack.c.l.b16 %v671
        %v682 = vunpack.c.h.b16 %v671
        %v683 = vunpack.c.l.b16 %v672
        %v684 = vunpack.c.h.b16 %v672
        %v685 = vpack.c.b16 %v679, %v677
        %v686 = vpack.c.b16 %v680, %v678
        %v687 = vpack.c.b16 %v683, %v681
        %v688 = vpack.c.b16 %v684, %v682
        %693 = vmatpush.bf16.msra.mxu0 0
        %694 = vmatpush.bf16.msra.mxu0 0
        %695 = vmatpush.bf16.msra.mxu0 0
        %696 = vmatpush.bf16.msra.mxu0 0
        %697 = vmatpush.bf16.msra.mxu0 0
        %698 = vmatpush.bf16.msra.mxu0 0
        %699 = vmatpush.bf16.msra.mxu0 %v687
        %700 = vmatpush.bf16.msra.mxu0 %v685
        %701 = vmatmul.bf16.gmra.mxu0 %v537
        %v702 = vpop.f32.mrf.mxu0
        %v703 = vadd.f32 0.0, %v702
        %v704 = vpop.f32.mrf.mxu0
        %705 = vdwg.mxu0
        %706 = vmatpush.bf16.msra.mxu0 0
        %707 = vmatpush.bf16.msra.mxu0 0
        %708 = vmatpush.bf16.msra.mxu0 0
        %709 = vmatpush.bf16.msra.mxu0 0
        %710 = vmatpush.bf16.msra.mxu0 0
        %711 = vmatpush.bf16.msra.mxu0 0
        %712 = vmatpush.bf16.msra.mxu0 %v688
        %713 = vmatpush.bf16.msra.mxu0 %v686
        %714 = vmatmul.bf16.gmra.mxu0 %v537
        %v715 = vpop.f32.mrf.mxu0
        %v716 = vadd.f32 0.0, %v715
        %v717 = vpop.f32.mrf.mxu0
        %718 = vdwg.mxu0
        %v719 = vmax.f32 %v667, %v703
        %v720 = vmax.f32 %v668, %v716
        %v721 = vld [vmem:[%s1] sm:$0xff]
        %723 = vset.pattern.permute.xlu0 0
        %724 = vperm.xlu0 %723, %v721
        %v725 = vpop.permute.xlu0 %724
        %v727 = vadd.f32 %v719, %v725
        %v728 = vadd.f32 %v720, %v725
        %v729 = vmax.f32 %v727, 0.0
        %v730 = vmax.f32 %v728, 0.0
        %731 = vst [vmem:[%s507] sm:$0xff] %v729
        %732 = vst [vmem:[%s507 + $0x8] sm:$0xff] %v730
        %s733 = smul.u32 2, %s17
        %p734 = scmp.lt.s32.totalorder %s733, 3
        %s735 = scalar_select %p734, %s733, 3
        %s736 = smul.addr %s735, 8
        %s737 = scalar_lea.vmem %s6, %s736
        // Predicated region
        $region197: #{lenet5_forward.3} parent=179 // pred_check
          %p738 = pneg %p181
        $region198: #{lenet5_forward.3} parent=179 // pred_check_branch
          %740 = sbr.rel (%p738) target = $region200
        $region199: #{lenet5_forward.3} parent=179 // pred_region
          %s741 = smul.u32 2, %s17
        $region200: #{lenet5_forward.3} parent=179 // pred_fallthru
          _
      $region180: #{lenet5_forward.3} parent=5 // pred_fallthru
        _
      %p742 = scmp.le.s32.totalorder 2, %s12
      // Predicated region
      $region201: #{lenet5_forward.3} parent=5 // pred_check
        %p743 = pneg %p742
      $region202: #{lenet5_forward.3} parent=5 // pred_check_branch
        %745 = sbr.rel (%p743) target = $region204
      $region203: #{lenet5_forward.3} parent=5 // pred_region
        %s746 = ssub.s32 %s12, 2
        // Predicated region
        $region205: #{lenet5_forward.3} parent=203 // pred_check
          %p747 = pneg %p187
        $region206: #{lenet5_forward.3} parent=203 // pred_check_branch
          %749 = sbr.rel (%p747) target = $region208
        $region207: #{lenet5_forward.3} parent=203 // pred_region
          %s750 = smul.u32 2, %s18
          %p751 = scmp.lt.s32.totalorder %s750, 3
          %s752 = scalar_select %p751, %s750, 3
          %s753 = smul.addr %s752, 8
          %s754 = scalar_lea.vmem %s6, %s753
        $region208: #{lenet5_forward.3} parent=203 // pred_fallthru
          _
      $region204: #{lenet5_forward.3} parent=5 // pred_fallthru
        _
    $region6: #{lenet5_forward.3} parent=1 // loop_footer
      %s16 = sadd.s32 1, %s12
    $region7: #{lenet5_forward.3} parent=1 // loop_footer_branch
      %11 = sbr.rel target = $region3
    $region8: #{lenet5_forward.3} parent=1 // loop_exit
      _

// kernel: lenet5_forward.4
$region0: #{lenet5_forward.4}
  #allocation0 [shape = 'u32[]', space=smem, size = 0x4, offset = 0x4, fixed_abs, tag = 'smem constant byte address 0x4 - core index']
  #allocation1 [shape = 'u32[72,128]{1,0:T(1,128)}', space=vmem, size = 0x9000, scoped, tag = 'internal scratch']
  %s0 = inlined_call_operand.vmem [shape: bf16[16,152], index: 0, kind: input, shape index: {}]
  %s1 = inlined_call_operand.vmem [shape: f32[16,1], index: 1, kind: input, shape index: {}]
  %s2 = inlined_call_operand.vmem [shape: bf16[152,128], index: 2, kind: input, shape index: {}]
  %s3 = inlined_call_operand.vmem [shape: bf16[152,128], index: 3, kind: input, shape index: {}]
  %s4 = inlined_call_operand.vmem [shape: bf16[152,128], index: 4, kind: input, shape index: {}]
  %s5 = inlined_call_operand.vmem [shape: bf16[152,128], index: 5, kind: input, shape index: {}]
  %s6 = inlined_call_operand.vmem [shape: f32[16,128], index: 6, kind: output, shape index: {}]
  %s7 = sld [smem:[#allocation0]]
  $region34: #{lenet5_forward.4} parent=0
    _
  %s9 = ssub.s32 1, %s7
  %s10 = scalar_select 0, %s9, %s7
  // Predicated region
  $region2: #{lenet5_forward.4} parent=0 // pred_check
    _
  $region3: #{lenet5_forward.4} parent=0 // pred_check_branch
    %12 = sbr.rel (0) target = $region5
  $region4: #{lenet5_forward.4} parent=0 // pred_region
    _
  $region5: #{lenet5_forward.4} parent=0 // pred_fallthru
    _
  // Predicated region
  $region6: #{lenet5_forward.4} parent=0 // pred_check
    _
  $region7: #{lenet5_forward.4} parent=0 // pred_check_branch
    %14 = sbr.rel (0) target = $region9
  $region8: #{lenet5_forward.4} parent=0 // pred_region
    _
  $region9: #{lenet5_forward.4} parent=0 // pred_fallthru
    _
  // Predicated region
  $region10: #{lenet5_forward.4} parent=0 // pred_check
    _
  $region11: #{lenet5_forward.4} parent=0 // pred_check_branch
    %16 = sbr.rel (0) target = $region13
  $region12: #{lenet5_forward.4} parent=0 // pred_region
    _
  $region13: #{lenet5_forward.4} parent=0 // pred_fallthru
    _
  // Predicated region
  $region14: #{lenet5_forward.4} parent=0 // pred_check
    _
  $region15: #{lenet5_forward.4} parent=0 // pred_check_branch
    %18 = sbr.rel (0) target = $region17
  $region16: #{lenet5_forward.4} parent=0 // pred_region
    _
  $region17: #{lenet5_forward.4} parent=0 // pred_fallthru
    _
  // Predicated region
  $region18: #{lenet5_forward.4} parent=0 // pred_check
    _
  $region19: #{lenet5_forward.4} parent=0 // pred_check_branch
    %20 = sbr.rel (0) target = $region21
  $region20: #{lenet5_forward.4} parent=0 // pred_region
    _
  $region21: #{lenet5_forward.4} parent=0 // pred_fallthru
    _
  // Predicated region
  $region22: #{lenet5_forward.4} parent=0 // pred_check
    _
  $region23: #{lenet5_forward.4} parent=0 // pred_check_branch
    %22 = sbr.rel (0) target = $region25
  $region24: #{lenet5_forward.4} parent=0 // pred_region
    _
  $region25: #{lenet5_forward.4} parent=0 // pred_fallthru
    _
  %v24 = vld [vmem:[%s0] sm:$0xff]
  %v25 = vld [vmem:[%s0 + $0x8] sm:$0xff]
  %v26 = vld [vmem:[%s2] sm:$0xf]
  %v27 = vld [vmem:[%s2 + $0x4] sm:$0xf]
  %v28 = vld [vmem:[%s2 + $0x8] sm:$0xf]
  %v29 = vld [vmem:[%s2 + $0xc] sm:$0xf]
  %v30 = vld [vmem:[%s2 + $0x10] sm:$0xf]
  %v31 = vld [vmem:[%s2 + $0x14] sm:$0xf]
  %v32 = vld [vmem:[%s2 + $0x18] sm:$0xf]
  %v33 = vld [vmem:[%s2 + $0x1c] sm:$0xf]
  %v34 = vld [vmem:[%s2 + $0x20] sm:$0xf]
  %v35 = vld [vmem:[%s2 + $0x24] sm:$0xf]
  %v36 = vld [vmem:[%s2 + $0x28] sm:$0xf]
  %v37 = vld [vmem:[%s2 + $0x2c] sm:$0xf]
  %v38 = vld [vmem:[%s2 + $0x30] sm:$0xf]
  %v39 = vld [vmem:[%s2 + $0x34] sm:$0xf]
  %v40 = vld [vmem:[%s2 + $0x38] sm:$0xf]
  %v41 = vld [vmem:[%s2 + $0x3c] sm:$0xf]
  %v42 = vld [vmem:[%s2 + $0x40] sm:$0xf]
  %v43 = vld [vmem:[%s2 + $0x44] sm:$0xf]
  %v44 = vld [vmem:[%s2 + $0x48] sm:$0xf]
  %v47 = vunpack.c.l.b16 %v24
  %v48 = vunpack.c.h.b16 %v24
  %v49 = vunpack.c.l.b16 %v25
  %v50 = vunpack.c.h.b16 %v25
  %v51 = vpack.c.b16 %v49, %v47
  %v52 = vpack.c.b16 %v50, %v48
  %v73 = vunpack.c.l.b16 %v26
  %v74 = vunpack.c.l.b16 %v27
  %v75 = vunpack.c.l.b16 %v28
  %v76 = vunpack.c.l.b16 %v29
  %v77 = vunpack.c.l.b16 %v30
  %v78 = vunpack.c.l.b16 %v31
  %v79 = vunpack.c.l.b16 %v32
  %v80 = vunpack.c.l.b16 %v33
  %v81 = vunpack.c.l.b16 %v34
  %v82 = vunpack.c.l.b16 %v35
  %v83 = vunpack.c.l.b16 %v36
  %v84 = vunpack.c.l.b16 %v37
  %v85 = vunpack.c.l.b16 %v38
  %v86 = vunpack.c.l.b16 %v39
  %v87 = vunpack.c.l.b16 %v40
  %v88 = vunpack.c.l.b16 %v41
  %v89 = vunpack.c.l.b16 %v42
  %v90 = vunpack.c.l.b16 %v43
  %v91 = vunpack.c.l.b16 %v44
  %v92 = vpack.c.b16 %v74, %v73
  %v93 = vpack.c.b16 %v76, %v75
  %v94 = vpack.c.b16 %v78, %v77
  %v95 = vpack.c.b16 %v80, %v79
  %v96 = vpack.c.b16 %v82, %v81
  %v97 = vpack.c.b16 %v84, %v83
  %v98 = vpack.c.b16 %v86, %v85
  %v99 = vpack.c.b16 %v88, %v87
  %v100 = vpack.c.b16 %v90, %v89
  %v101 = vpack.c.b16 %v91, %v91
  %vm111 = vcmask 195584
  %v113 = vsel %vm111, %v52, 0
  %vm115 = vcmask 1043456
  %v117 = vsel %vm115, %v101, 0
  %119 = vmatpush.bf16.msra.mxu0 %v99
  %120 = vmatpush.bf16.msra.mxu0 %v98
  %121 = vmatpush.bf16.msra.mxu0 %v97
  %122 = vmatpush.bf16.msra.mxu0 %v96
  %123 = vmatpush.bf16.msra.mxu0 %v95
  %124 = vmatpush.bf16.msra.mxu0 %v94
  %125 = vmatpush.bf16.msra.mxu0 %v93
  %126 = vmatpush.bf16.msra.mxu0 %v92
  %127 = vmatmul.bf16.gmra.mxu0 %v51
  %v128 = vpop.f32.mrf.mxu0
  %v129 = vadd.f32 0.0, %v128
  %v130 = vpop.f32.mrf.mxu0
  %v131 = vadd.f32 0.0, %v130
  %132 = vdwg.mxu0
  %133 = vmatpush.bf16.msra.mxu0 0
  %134 = vmatpush.bf16.msra.mxu0 0
  %135 = vmatpush.bf16.msra.mxu0 0
  %136 = vmatpush.bf16.msra.mxu0 0
  %137 = vmatpush.bf16.msra.mxu0 0
  %138 = vmatpush.bf16.msra.mxu0 0
  %139 = vmatpush.bf16.msra.mxu0 %v117
  %140 = vmatpush.bf16.msra.mxu0 %v100
  %141 = vmatmul.bf16.gmra.mxu0 %v113
  %v142 = vpop.f32.mrf.mxu0
  %v143 = vadd.f32 %v129, %v142
  %v144 = vpop.f32.mrf.mxu0
  %v145 = vadd.f32 %v131, %v144
  %146 = vdwg.mxu0
  %v147 = vld [vmem:[%s3] sm:$0xf]
  %v148 = vld [vmem:[%s3 + $0x4] sm:$0xf]
  %v149 = vld [vmem:[%s3 + $0x8] sm:$0xf]
  %v150 = vld [vmem:[%s3 + $0xc] sm:$0xf]
  %v151 = vld [vmem:[%s3 + $0x10] sm:$0xf]
  %v152 = vld [vmem:[%s3 + $0x14] sm:$0xf]
  %v153 = vld [vmem:[%s3 + $0x18] sm:$0xf]
  %v154 = vld [vmem:[%s3 + $0x1c] sm:$0xf]
  %v155 = vld [vmem:[%s3 + $0x20] sm:$0xf]
  %v156 = vld [vmem:[%s3 + $0x24] sm:$0xf]
  %v157 = vld [vmem:[%s3 + $0x28] sm:$0xf]
  %v158 = vld [vmem:[%s3 + $0x2c] sm:$0xf]
  %v159 = vld [vmem:[%s3 + $0x30] sm:$0xf]
  %v160 = vld [vmem:[%s3 + $0x34] sm:$0xf]
  %v161 = vld [vmem:[%s3 + $0x38] sm:$0xf]
  %v162 = vld [vmem:[%s3 + $0x3c] sm:$0xf]
  %v163 = vld [vmem:[%s3 + $0x40] sm:$0xf]
  %v164 = vld [vmem:[%s3 + $0x44] sm:$0xf]
  %v165 = vld [vmem:[%s3 + $0x48] sm:$0xf]
  %v185 = vunpack.c.l.b16 %v147
  %v186 = vunpack.c.l.b16 %v148
  %v187 = vunpack.c.l.b16 %v149
  %v188 = vunpack.c.l.b16 %v150
  %v189 = vunpack.c.l.b16 %v151
  %v190 = vunpack.c.l.b16 %v152
  %v191 = vunpack.c.l.b16 %v153
  %v192 = vunpack.c.l.b16 %v154
  %v193 = vunpack.c.l.b16 %v155
  %v194 = vunpack.c.l.b16 %v156
  %v195 = vunpack.c.l.b16 %v157
  %v196 = vunpack.c.l.b16 %v158
  %v197 = vunpack.c.l.b16 %v159
  %v198 = vunpack.c.l.b16 %v160
  %v199 = vunpack.c.l.b16 %v161
  %v200 = vunpack.c.l.b16 %v162
  %v201 = vunpack.c.l.b16 %v163
  %v202 = vunpack.c.l.b16 %v164
  %v203 = vunpack.c.l.b16 %v165
  %v204 = vpack.c.b16 %v186, %v185
  %v205 = vpack.c.b16 %v188, %v187
  %v206 = vpack.c.b16 %v190, %v189
  %v207 = vpack.c.b16 %v192, %v191
  %v208 = vpack.c.b16 %v194, %v193
  %v209 = vpack.c.b16 %v196, %v195
  %v210 = vpack.c.b16 %v198, %v197
  %v211 = vpack.c.b16 %v200, %v199
  %v212 = vpack.c.b16 %v202, %v201
  %v213 = vpack.c.b16 %v203, %v203
  %v224 = vsel %vm115, %v213, 0
  %226 = vmatpush.bf16.msra.mxu0 %v211
  %227 = vmatpush.bf16.msra.mxu0 %v210
  %228 = vmatpush.bf16.msra.mxu0 %v209
  %229 = vmatpush.bf16.msra.mxu0 %v208
  %230 = vmatpush.bf16.msra.mxu0 %v207
  %231 = vmatpush.bf16.msra.mxu0 %v206
  %232 = vmatpush.bf16.msra.mxu0 %v205
  %233 = vmatpush.bf16.msra.mxu0 %v204
  %234 = vmatmul.bf16.gmra.mxu0 %v51
  %v235 = vpop.f32.mrf.mxu0
  %v236 = vadd.f32 0.0, %v235
  %v237 = vpop.f32.mrf.mxu0
  %v238 = vadd.f32 0.0, %v237
  %239 = vdwg.mxu0
  %240 = vmatpush.bf16.msra.mxu0 0
  %241 = vmatpush.bf16.msra.mxu0 0
  %242 = vmatpush.bf16.msra.mxu0 0
  %243 = vmatpush.bf16.msra.mxu0 0
  %244 = vmatpush.bf16.msra.mxu0 0
  %245 = vmatpush.bf16.msra.mxu0 0
  %246 = vmatpush.bf16.msra.mxu0 %v224
  %247 = vmatpush.bf16.msra.mxu0 %v212
  %248 = vmatmul.bf16.gmra.mxu0 %v113
  %v249 = vpop.f32.mrf.mxu0
  %v250 = vadd.f32 %v236, %v249
  %v251 = vpop.f32.mrf.mxu0
  %v252 = vadd.f32 %v238, %v251
  %253 = vdwg.mxu0
  %v254 = vmax.f32 %v143, %v250
  %v255 = vmax.f32 %v145, %v252
  %v256 = vld [vmem:[%s4] sm:$0xf]
  %v257 = vld [vmem:[%s4 + $0x4] sm:$0xf]
  %v258 = vld [vmem:[%s4 + $0x8] sm:$0xf]
  %v259 = vld [vmem:[%s4 + $0xc] sm:$0xf]
  %v260 = vld [vmem:[%s4 + $0x10] sm:$0xf]
  %v261 = vld [vmem:[%s4 + $0x14] sm:$0xf]
  %v262 = vld [vmem:[%s4 + $0x18] sm:$0xf]
  %v263 = vld [vmem:[%s4 + $0x1c] sm:$0xf]
  %v264 = vld [vmem:[%s4 + $0x20] sm:$0xf]
  %v265 = vld [vmem:[%s4 + $0x24] sm:$0xf]
  %v266 = vld [vmem:[%s4 + $0x28] sm:$0xf]
  %v267 = vld [vmem:[%s4 + $0x2c] sm:$0xf]
  %v268 = vld [vmem:[%s4 + $0x30] sm:$0xf]
  %v269 = vld [vmem:[%s4 + $0x34] sm:$0xf]
  %v270 = vld [vmem:[%s4 + $0x38] sm:$0xf]
  %v271 = vld [vmem:[%s4 + $0x3c] sm:$0xf]
  %v272 = vld [vmem:[%s4 + $0x40] sm:$0xf]
  %v273 = vld [vmem:[%s4 + $0x44] sm:$0xf]
  %v274 = vld [vmem:[%s4 + $0x48] sm:$0xf]
  %v294 = vunpack.c.l.b16 %v256
  %v295 = vunpack.c.l.b16 %v257
  %v296 = vunpack.c.l.b16 %v258
  %v297 = vunpack.c.l.b16 %v259
  %v298 = vunpack.c.l.b16 %v260
  %v299 = vunpack.c.l.b16 %v261
  %v300 = vunpack.c.l.b16 %v262
  %v301 = vunpack.c.l.b16 %v263
  %v302 = vunpack.c.l.b16 %v264
  %v303 = vunpack.c.l.b16 %v265
  %v304 = vunpack.c.l.b16 %v266
  %v305 = vunpack.c.l.b16 %v267
  %v306 = vunpack.c.l.b16 %v268
  %v307 = vunpack.c.l.b16 %v269
  %v308 = vunpack.c.l.b16 %v270
  %v309 = vunpack.c.l.b16 %v271
  %v310 = vunpack.c.l.b16 %v272
  %v311 = vunpack.c.l.b16 %v273
  %v312 = vunpack.c.l.b16 %v274
  %v313 = vpack.c.b16 %v295, %v294
  %v314 = vpack.c.b16 %v297, %v296
  %v315 = vpack.c.b16 %v299, %v298
  %v316 = vpack.c.b16 %v301, %v300
  %v317 = vpack.c.b16 %v303, %v302
  %v318 = vpack.c.b16 %v305, %v304
  %v319 = vpack.c.b16 %v307, %v306
  %v320 = vpack.c.b16 %v309, %v308
  %v321 = vpack.c.b16 %v311, %v310
  %v322 = vpack.c.b16 %v312, %v312
  %v333 = vsel %vm115, %v322, 0
  %335 = vmatpush.bf16.msra.mxu0 %v320
  %336 = vmatpush.bf16.msra.mxu0 %v319
  %337 = vmatpush.bf16.msra.mxu0 %v318
  %338 = vmatpush.bf16.msra.mxu0 %v317
  %339 = vmatpush.bf16.msra.mxu0 %v316
  %340 = vmatpush.bf16.msra.mxu0 %v315
  %341 = vmatpush.bf16.msra.mxu0 %v314
  %342 = vmatpush.bf16.msra.mxu0 %v313
  %343 = vmatmul.bf16.gmra.mxu0 %v51
  %v344 = vpop.f32.mrf.mxu0
  %v345 = vadd.f32 0.0, %v344
  %v346 = vpop.f32.mrf.mxu0
  %v347 = vadd.f32 0.0, %v346
  %348 = vdwg.mxu0
  %349 = vmatpush.bf16.msra.mxu0 0
  %350 = vmatpush.bf16.msra.mxu0 0
  %351 = vmatpush.bf16.msra.mxu0 0
  %352 = vmatpush.bf16.msra.mxu0 0
  %353 = vmatpush.bf16.msra.mxu0 0
  %354 = vmatpush.bf16.msra.mxu0 0
  %355 = vmatpush.bf16.msra.mxu0 %v333
  %356 = vmatpush.bf16.msra.mxu0 %v321
  %357 = vmatmul.bf16.gmra.mxu0 %v113
  %v358 = vpop.f32.mrf.mxu0
  %v359 = vadd.f32 %v345, %v358
  %v360 = vpop.f32.mrf.mxu0
  %v361 = vadd.f32 %v347, %v360
  %362 = vdwg.mxu0
  %v363 = vmax.f32 %v254, %v359
  %v364 = vmax.f32 %v255, %v361
  %v365 = vld [vmem:[%s5] sm:$0xf]
  %v366 = vld [vmem:[%s5 + $0x4] sm:$0xf]
  %v367 = vld [vmem:[%s5 + $0x8] sm:$0xf]
  %v368 = vld [vmem:[%s5 + $0xc] sm:$0xf]
  %v369 = vld [vmem:[%s5 + $0x10] sm:$0xf]
  %v370 = vld [vmem:[%s5 + $0x14] sm:$0xf]
  %v371 = vld [vmem:[%s5 + $0x18] sm:$0xf]
  %v372 = vld [vmem:[%s5 + $0x1c] sm:$0xf]
  %v373 = vld [vmem:[%s5 + $0x20] sm:$0xf]
  %v374 = vld [vmem:[%s5 + $0x24] sm:$0xf]
  %v375 = vld [vmem:[%s5 + $0x28] sm:$0xf]
  %v376 = vld [vmem:[%s5 + $0x2c] sm:$0xf]
  %v377 = vld [vmem:[%s5 + $0x30] sm:$0xf]
  %v378 = vld [vmem:[%s5 + $0x34] sm:$0xf]
  %v379 = vld [vmem:[%s5 + $0x38] sm:$0xf]
  %v380 = vld [vmem:[%s5 + $0x3c] sm:$0xf]
  %v381 = vld [vmem:[%s5 + $0x40] sm:$0xf]
  %v382 = vld [vmem:[%s5 + $0x44] sm:$0xf]
  %v383 = vld [vmem:[%s5 + $0x48] sm:$0xf]
  %v403 = vunpack.c.l.b16 %v365
  %v404 = vunpack.c.l.b16 %v366
  %v405 = vunpack.c.l.b16 %v367
  %v406 = vunpack.c.l.b16 %v368
  %v407 = vunpack.c.l.b16 %v369
  %v408 = vunpack.c.l.b16 %v370
  %v409 = vunpack.c.l.b16 %v371
  %v410 = vunpack.c.l.b16 %v372
  %v411 = vunpack.c.l.b16 %v373
  %v412 = vunpack.c.l.b16 %v374
  %v413 = vunpack.c.l.b16 %v375
  %v414 = vunpack.c.l.b16 %v376
  %v415 = vunpack.c.l.b16 %v377
  %v416 = vunpack.c.l.b16 %v378
  %v417 = vunpack.c.l.b16 %v379
  %v418 = vunpack.c.l.b16 %v380
  %v419 = vunpack.c.l.b16 %v381
  %v420 = vunpack.c.l.b16 %v382
  %v421 = vunpack.c.l.b16 %v383
  %v422 = vpack.c.b16 %v404, %v403
  %v423 = vpack.c.b16 %v406, %v405
  %v424 = vpack.c.b16 %v408, %v407
  %v425 = vpack.c.b16 %v410, %v409
  %v426 = vpack.c.b16 %v412, %v411
  %v427 = vpack.c.b16 %v414, %v413
  %v428 = vpack.c.b16 %v416, %v415
  %v429 = vpack.c.b16 %v418, %v417
  %v430 = vpack.c.b16 %v420, %v419
  %v431 = vpack.c.b16 %v421, %v421
  %v442 = vsel %vm115, %v431, 0
  %444 = vmatpush.bf16.msra.mxu0 %v429
  %445 = vmatpush.bf16.msra.mxu0 %v428
  %446 = vmatpush.bf16.msra.mxu0 %v427
  %447 = vmatpush.bf16.msra.mxu0 %v426
  %448 = vmatpush.bf16.msra.mxu0 %v425
  %449 = vmatpush.bf16.msra.mxu0 %v424
  %450 = vmatpush.bf16.msra.mxu0 %v423
  %451 = vmatpush.bf16.msra.mxu0 %v422
  %452 = vmatmul.bf16.gmra.mxu0 %v51
  %v453 = vpop.f32.mrf.mxu0
  %v454 = vadd.f32 0.0, %v453
  %v455 = vpop.f32.mrf.mxu0
  %v456 = vadd.f32 0.0, %v455
  %457 = vdwg.mxu0
  %458 = vmatpush.bf16.msra.mxu0 0
  %459 = vmatpush.bf16.msra.mxu0 0
  %460 = vmatpush.bf16.msra.mxu0 0
  %461 = vmatpush.bf16.msra.mxu0 0
  %462 = vmatpush.bf16.msra.mxu0 0
  %463 = vmatpush.bf16.msra.mxu0 0
  %464 = vmatpush.bf16.msra.mxu0 %v442
  %465 = vmatpush.bf16.msra.mxu0 %v430
  %466 = vmatmul.bf16.gmra.mxu0 %v113
  %v467 = vpop.f32.mrf.mxu0
  %v468 = vadd.f32 %v454, %v467
  %v469 = vpop.f32.mrf.mxu0
  %v470 = vadd.f32 %v456, %v469
  %471 = vdwg.mxu0
  %v472 = vmax.f32 %v363, %v468
  %v473 = vmax.f32 %v364, %v470
  %v474 = vld [vmem:[%s1] sm:$0xff]
  %v475 = vld [vmem:[%s1 + $0x8] sm:$0xff]
  %477 = vset.pattern.permute.xlu0 0
  %478 = vperm.xlu0 %477, %v474
  %v479 = vpop.permute.xlu0 %478
  %482 = vset.pattern.permute.xlu0 0
  %483 = vperm.xlu0 %482, %v475
  %v484 = vpop.permute.xlu0 %483
  %v486 = vadd.f32 %v472, %v479
  %v487 = vadd.f32 %v473, %v484
  %v488 = vmax.f32 %v486, 0.0
  %v489 = vmax.f32 %v487, 0.0
  %490 = vst [vmem:[%s6] sm:$0xff] %v488
  %491 = vst [vmem:[%s6 + $0x8] sm:$0xff] %v489
  // Predicated region
  $region26: #{lenet5_forward.4} parent=0 // pred_check
    _
  $region27: #{lenet5_forward.4} parent=0 // pred_check_branch
    %493 = sbr.rel (0) target = $region29
  $region28: #{lenet5_forward.4} parent=0 // pred_region
    _
  $region29: #{lenet5_forward.4} parent=0 // pred_fallthru
    _
  // Predicated region
  $region30: #{lenet5_forward.4} parent=0 // pred_check
    _
  $region31: #{lenet5_forward.4} parent=0 // pred_check_branch
    %495 = sbr.rel (0) target = $region33
  $region32: #{lenet5_forward.4} parent=0 // pred_region
    _
  $region33: #{lenet5_forward.4} parent=0 // pred_fallthru
    _

// kernel: lenet5_forward.5
$region0: #{lenet5_forward.5}
  #allocation0 [shape = 'u32[]', space=smem, size = 0x4, offset = 0x4, fixed_abs, tag = 'smem constant byte address 0x4 - core index']
  #allocation1 [shape = 'u32[72,128]{1,0:T(1,128)}', space=vmem, size = 0x9000, scoped, tag = 'internal scratch']
  %s0 = inlined_call_operand.vmem [shape: bf16[8,256], index: 0, kind: input, shape index: {}]
  %s1 = inlined_call_operand.vmem [shape: bf16[256,128], index: 1, kind: input, shape index: {}]
  %s2 = inlined_call_operand.vmem [shape: f32[1,128], index: 2, kind: input, shape index: {}]
  %s3 = inlined_call_operand.vmem [shape: bf16[128,128], index: 3, kind: input, shape index: {}]
  %s4 = inlined_call_operand.vmem [shape: f32[1,128], index: 4, kind: input, shape index: {}]
  %s5 = inlined_call_operand.vmem [shape: bf16[128,128], index: 5, kind: input, shape index: {}]
  %s6 = inlined_call_operand.vmem [shape: f32[1,128], index: 6, kind: input, shape index: {}]
  %s7 = inlined_call_operand.vmem [shape: f32[8,128], index: 7, kind: output, shape index: {}]
  %s8 = sld [smem:[#allocation0]]
  $region38: #{lenet5_forward.5} parent=0
    _
  %s10 = ssub.s32 1, %s8
  %s11 = scalar_select 0, %s10, %s8
  // Predicated region
  $region2: #{lenet5_forward.5} parent=0 // pred_check
    _
  $region3: #{lenet5_forward.5} parent=0 // pred_check_branch
    %13 = sbr.rel (0) target = $region5
  $region4: #{lenet5_forward.5} parent=0 // pred_region
    _
  $region5: #{lenet5_forward.5} parent=0 // pred_fallthru
    _
  // Predicated region
  $region6: #{lenet5_forward.5} parent=0 // pred_check
    _
  $region7: #{lenet5_forward.5} parent=0 // pred_check_branch
    %15 = sbr.rel (0) target = $region9
  $region8: #{lenet5_forward.5} parent=0 // pred_region
    _
  $region9: #{lenet5_forward.5} parent=0 // pred_fallthru
    _
  // Predicated region
  $region10: #{lenet5_forward.5} parent=0 // pred_check
    _
  $region11: #{lenet5_forward.5} parent=0 // pred_check_branch
    %17 = sbr.rel (0) target = $region13
  $region12: #{lenet5_forward.5} parent=0 // pred_region
    _
  $region13: #{lenet5_forward.5} parent=0 // pred_fallthru
    _
  // Predicated region
  $region14: #{lenet5_forward.5} parent=0 // pred_check
    _
  $region15: #{lenet5_forward.5} parent=0 // pred_check_branch
    %19 = sbr.rel (0) target = $region17
  $region16: #{lenet5_forward.5} parent=0 // pred_region
    _
  $region17: #{lenet5_forward.5} parent=0 // pred_fallthru
    _
  // Predicated region
  $region18: #{lenet5_forward.5} parent=0 // pred_check
    _
  $region19: #{lenet5_forward.5} parent=0 // pred_check_branch
    %21 = sbr.rel (0) target = $region21
  $region20: #{lenet5_forward.5} parent=0 // pred_region
    _
  $region21: #{lenet5_forward.5} parent=0 // pred_fallthru
    _
  // Predicated region
  $region22: #{lenet5_forward.5} parent=0 // pred_check
    _
  $region23: #{lenet5_forward.5} parent=0 // pred_check_branch
    %23 = sbr.rel (0) target = $region25
  $region24: #{lenet5_forward.5} parent=0 // pred_region
    _
  $region25: #{lenet5_forward.5} parent=0 // pred_fallthru
    _
  // Predicated region
  $region26: #{lenet5_forward.5} parent=0 // pred_check
    _
  $region27: #{lenet5_forward.5} parent=0 // pred_check_branch
    %25 = sbr.rel (0) target = $region29
  $region28: #{lenet5_forward.5} parent=0 // pred_region
    _
  $region29: #{lenet5_forward.5} parent=0 // pred_fallthru
    _
  %v26 = vld [vmem:[%s0] sm:$0xff]
  %v27 = vld [vmem:[%s1] sm:$0xf]
  %v28 = vld [vmem:[%s1 + $0x4] sm:$0xf]
  %v29 = vld [vmem:[%s1 + $0x8] sm:$0xf]
  %v30 = vld [vmem:[%s1 + $0xc] sm:$0xf]
  %v31 = vld [vmem:[%s1 + $0x10] sm:$0xf]
  %v32 = vld [vmem:[%s1 + $0x14] sm:$0xf]
  %v33 = vld [vmem:[%s1 + $0x18] sm:$0xf]
  %v34 = vld [vmem:[%s1 + $0x1c] sm:$0xf]
  %v35 = vld [vmem:[%s1 + $0x20] sm:$0xf]
  %v36 = vld [vmem:[%s1 + $0x24] sm:$0xf]
  %v37 = vld [vmem:[%s1 + $0x28] sm:$0xf]
  %v38 = vld [vmem:[%s1 + $0x2c] sm:$0xf]
  %v39 = vld [vmem:[%s1 + $0x30] sm:$0xf]
  %v40 = vld [vmem:[%s1 + $0x34] sm:$0xf]
  %v41 = vld [vmem:[%s1 + $0x38] sm:$0xf]
  %v42 = vld [vmem:[%s1 + $0x3c] sm:$0xf]
  %v43 = vld [vmem:[%s1 + $0x40] sm:$0xf]
  %v44 = vld [vmem:[%s1 + $0x44] sm:$0xf]
  %v45 = vld [vmem:[%s1 + $0x48] sm:$0xf]
  %v46 = vld [vmem:[%s1 + $0x4c] sm:$0xf]
  %v47 = vld [vmem:[%s1 + $0x50] sm:$0xf]
  %v48 = vld [vmem:[%s1 + $0x54] sm:$0xf]
  %v49 = vld [vmem:[%s1 + $0x58] sm:$0xf]
  %v50 = vld [vmem:[%s1 + $0x5c] sm:$0xf]
  %v51 = vld [vmem:[%s1 + $0x60] sm:$0xf]
  %v52 = vld [vmem:[%s1 + $0x64] sm:$0xf]
  %v53 = vld [vmem:[%s1 + $0x68] sm:$0xf]
  %v54 = vld [vmem:[%s1 + $0x6c] sm:$0xf]
  %v55 = vld [vmem:[%s1 + $0x70] sm:$0xf]
  %v56 = vld [vmem:[%s1 + $0x74] sm:$0xf]
  %v57 = vld [vmem:[%s1 + $0x78] sm:$0xf]
  %v58 = vld [vmem:[%s1 + $0x7c] sm:$0xf]
  %v59 = vld [vmem:[%s2] sm:$0x1]
  %v61 = vperm.slane %v59, 0
  %v64 = vunpack.c.l.b16 %v26
  %v65 = vunpack.c.h.b16 %v26
  %v66 = vpack.c.b16 %v64, %v64
  %v67 = vpack.c.b16 %v65, %v65
  %v102 = vunpack.c.l.b16 %v27
  %v103 = vunpack.c.l.b16 %v28
  %v104 = vunpack.c.l.b16 %v29
  %v105 = vunpack.c.l.b16 %v30
  %v106 = vunpack.c.l.b16 %v31
  %v107 = vunpack.c.l.b16 %v32
  %v108 = vunpack.c.l.b16 %v33
  %v109 = vunpack.c.l.b16 %v34
  %v110 = vunpack.c.l.b16 %v35
  %v111 = vunpack.c.l.b16 %v36
  %v112 = vunpack.c.l.b16 %v37
  %v113 = vunpack.c.l.b16 %v38
  %v114 = vunpack.c.l.b16 %v39
  %v115 = vunpack.c.l.b16 %v40
  %v116 = vunpack.c.l.b16 %v41
  %v117 = vunpack.c.l.b16 %v42
  %v118 = vunpack.c.l.b16 %v43
  %v119 = vunpack.c.l.b16 %v44
  %v120 = vunpack.c.l.b16 %v45
  %v121 = vunpack.c.l.b16 %v46
  %v122 = vunpack.c.l.b16 %v47
  %v123 = vunpack.c.l.b16 %v48
  %v124 = vunpack.c.l.b16 %v49
  %v125 = vunpack.c.l.b16 %v50
  %v126 = vunpack.c.l.b16 %v51
  %v127 = vunpack.c.l.b16 %v52
  %v128 = vunpack.c.l.b16 %v53
  %v129 = vunpack.c.l.b16 %v54
  %v130 = vunpack.c.l.b16 %v55
  %v131 = vunpack.c.l.b16 %v56
  %v132 = vunpack.c.l.b16 %v57
  %v133 = vunpack.c.l.b16 %v58
  %v134 = vpack.c.b16 %v103, %v102
  %v135 = vpack.c.b16 %v105, %v104
  %v136 = vpack.c.b16 %v107, %v106
  %v137 = vpack.c.b16 %v109, %v108
  %v138 = vpack.c.b16 %v111, %v110
  %v139 = vpack.c.b16 %v113, %v112
  %v140 = vpack.c.b16 %v115, %v114
  %v141 = vpack.c.b16 %v117, %v116
  %v142 = vpack.c.b16 %v119, %v118
  %v143 = vpack.c.b16 %v121, %v120
  %v144 = vpack.c.b16 %v123, %v122
  %v145 = vpack.c.b16 %v125, %v124
  %v146 = vpack.c.b16 %v127, %v126
  %v147 = vpack.c.b16 %v129, %v128
  %v148 = vpack.c.b16 %v131, %v130
  %v149 = vpack.c.b16 %v133, %v132
  %166 = vmatpush.bf16.msra.mxu0 %v141
  %167 = vmatpush.bf16.msra.mxu0 %v140
  %168 = vmatpush.bf16.msra.mxu0 %v139
  %169 = vmatpush.bf16.msra.mxu0 %v138
  %170 = vmatpush.bf16.msra.mxu0 %v137
  %171 = vmatpush.bf16.msra.mxu0 %v136
  %172 = vmatpush.bf16.msra.mxu0 %v135
  %173 = vmatpush.bf16.msra.mxu0 %v134
  %174 = vmatmul.bf16.gmra.mxu0 %v66
  %v175 = vpop.f32.mrf.mxu0
  %v176 = vadd.f32 %v61, %v175
  %v177 = vpop.f32.mrf.mxu0
  %178 = vdwg.mxu0
  %179 = vmatpush.bf16.msra.mxu0 %v149
  %180 = vmatpush.bf16.msra.mxu0 %v148
  %181 = vmatpush.bf16.msra.mxu0 %v147
  %182 = vmatpush.bf16.msra.mxu0 %v146
  %183 = vmatpush.bf16.msra.mxu0 %v145
  %184 = vmatpush.bf16.msra.mxu0 %v144
  %185 = vmatpush.bf16.msra.mxu0 %v143
  %186 = vmatpush.bf16.msra.mxu0 %v142
  %187 = vmatmul.bf16.gmra.mxu0 %v67
  %v188 = vpop.f32.mrf.mxu0
  %v189 = vadd.f32 %v176, %v188
  %v190 = vpop.f32.mrf.mxu0
  %191 = vdwg.mxu0
  %v192 = vmax.f32 %v189, 0.0
  %v193 = vpack.c.bf16 %v192, %v192
  %v194 = vld [vmem:[%s3] sm:$0xf]
  %v195 = vld [vmem:[%s3 + $0x4] sm:$0xf]
  %v196 = vld [vmem:[%s3 + $0x8] sm:$0xf]
  %v197 = vld [vmem:[%s3 + $0xc] sm:$0xf]
  %v198 = vld [vmem:[%s3 + $0x10] sm:$0xf]
  %v199 = vld [vmem:[%s3 + $0x14] sm:$0xf]
  %v200 = vld [vmem:[%s3 + $0x18] sm:$0xf]
  %v201 = vld [vmem:[%s3 + $0x1c] sm:$0xf]
  %v202 = vld [vmem:[%s3 + $0x20] sm:$0xf]
  %v203 = vld [vmem:[%s3 + $0x24] sm:$0xf]
  %v204 = vld [vmem:[%s3 + $0x28] sm:$0xf]
  %v205 = vld [vmem:[%s3 + $0x2c] sm:$0xf]
  %v206 = vld [vmem:[%s3 + $0x30] sm:$0xf]
  %v207 = vld [vmem:[%s3 + $0x34] sm:$0xf]
  %v208 = vld [vmem:[%s3 + $0x38] sm:$0xf]
  %v209 = vld [vmem:[%s3 + $0x3c] sm:$0xf]
  %v210 = vld [vmem:[%s4] sm:$0x1]
  %v212 = vperm.slane %v210, 0
  %v230 = vunpack.c.l.b16 %v194
  %v231 = vunpack.c.l.b16 %v195
  %v232 = vunpack.c.l.b16 %v196
  %v233 = vunpack.c.l.b16 %v197
  %v234 = vunpack.c.l.b16 %v198
  %v235 = vunpack.c.l.b16 %v199
  %v236 = vunpack.c.l.b16 %v200
  %v237 = vunpack.c.l.b16 %v201
  %v238 = vunpack.c.l.b16 %v202
  %v239 = vunpack.c.l.b16 %v203
  %v240 = vunpack.c.l.b16 %v204
  %v241 = vunpack.c.l.b16 %v205
  %v242 = vunpack.c.l.b16 %v206
  %v243 = vunpack.c.l.b16 %v207
  %v244 = vunpack.c.l.b16 %v208
  %v245 = vunpack.c.l.b16 %v209
  %v246 = vpack.c.b16 %v231, %v230
  %v247 = vpack.c.b16 %v233, %v232
  %v248 = vpack.c.b16 %v235, %v234
  %v249 = vpack.c.b16 %v237, %v236
  %v250 = vpack.c.b16 %v239, %v238
  %v251 = vpack.c.b16 %v241, %v240
  %v252 = vpack.c.b16 %v243, %v242
  %v253 = vpack.c.b16 %v245, %v244
  %262 = vmatpush.bf16.msra.mxu0 %v253
  %263 = vmatpush.bf16.msra.mxu0 %v252
  %264 = vmatpush.bf16.msra.mxu0 %v251
  %265 = vmatpush.bf16.msra.mxu0 %v250
  %266 = vmatpush.bf16.msra.mxu0 %v249
  %267 = vmatpush.bf16.msra.mxu0 %v248
  %268 = vmatpush.bf16.msra.mxu0 %v247
  %269 = vmatpush.bf16.msra.mxu0 %v246
  %270 = vmatmul.bf16.gmra.mxu0 %v193
  %v271 = vpop.f32.mrf.mxu0
  %v272 = vadd.f32 %v212, %v271
  %v273 = vpop.f32.mrf.mxu0
  %274 = vdwg.mxu0
  %v275 = vmax.f32 %v272, 0.0
  %v276 = vpack.c.bf16 %v275, %v275
  %v277 = vld [vmem:[%s5] sm:$0xf]
  %v278 = vld [vmem:[%s5 + $0x4] sm:$0xf]
  %v279 = vld [vmem:[%s5 + $0x8] sm:$0xf]
  %v280 = vld [vmem:[%s5 + $0xc] sm:$0xf]
  %v281 = vld [vmem:[%s5 + $0x10] sm:$0xf]
  %v282 = vld [vmem:[%s5 + $0x14] sm:$0xf]
  %v283 = vld [vmem:[%s5 + $0x18] sm:$0xf]
  %v284 = vld [vmem:[%s5 + $0x1c] sm:$0xf]
  %v285 = vld [vmem:[%s5 + $0x20] sm:$0xf]
  %v286 = vld [vmem:[%s5 + $0x24] sm:$0xf]
  %v287 = vld [vmem:[%s5 + $0x28] sm:$0xf]
  %v288 = vld [vmem:[%s5 + $0x2c] sm:$0xf]
  %v289 = vld [vmem:[%s5 + $0x30] sm:$0xf]
  %v290 = vld [vmem:[%s5 + $0x34] sm:$0xf]
  %v291 = vld [vmem:[%s5 + $0x38] sm:$0xf]
  %v292 = vld [vmem:[%s5 + $0x3c] sm:$0xf]
  %v293 = vld [vmem:[%s6] sm:$0x1]
  %v295 = vperm.slane %v293, 0
  %v313 = vunpack.c.l.b16 %v277
  %v314 = vunpack.c.l.b16 %v278
  %v315 = vunpack.c.l.b16 %v279
  %v316 = vunpack.c.l.b16 %v280
  %v317 = vunpack.c.l.b16 %v281
  %v318 = vunpack.c.l.b16 %v282
  %v319 = vunpack.c.l.b16 %v283
  %v320 = vunpack.c.l.b16 %v284
  %v321 = vunpack.c.l.b16 %v285
  %v322 = vunpack.c.l.b16 %v286
  %v323 = vunpack.c.l.b16 %v287
  %v324 = vunpack.c.l.b16 %v288
  %v325 = vunpack.c.l.b16 %v289
  %v326 = vunpack.c.l.b16 %v290
  %v327 = vunpack.c.l.b16 %v291
  %v328 = vunpack.c.l.b16 %v292
  %v329 = vpack.c.b16 %v314, %v313
  %v330 = vpack.c.b16 %v316, %v315
  %v331 = vpack.c.b16 %v318, %v317
  %v332 = vpack.c.b16 %v320, %v319
  %v333 = vpack.c.b16 %v322, %v321
  %v334 = vpack.c.b16 %v324, %v323
  %v335 = vpack.c.b16 %v326, %v325
  %v336 = vpack.c.b16 %v328, %v327
  %345 = vmatpush.bf16.msra.mxu0 %v336
  %346 = vmatpush.bf16.msra.mxu0 %v335
  %347 = vmatpush.bf16.msra.mxu0 %v334
  %348 = vmatpush.bf16.msra.mxu0 %v333
  %349 = vmatpush.bf16.msra.mxu0 %v332
  %350 = vmatpush.bf16.msra.mxu0 %v331
  %351 = vmatpush.bf16.msra.mxu0 %v330
  %352 = vmatpush.bf16.msra.mxu0 %v329
  %353 = vmatmul.bf16.gmra.mxu0 %v276
  %v354 = vpop.f32.mrf.mxu0
  %v355 = vadd.f32 %v295, %v354
  %v356 = vpop.f32.mrf.mxu0
  %357 = vdwg.mxu0
  %v358 = vmax.f32 %v355, 0.0
  %359 = vst [vmem:[%s7] sm:$0xff] %v358
  // Predicated region
  $region30: #{lenet5_forward.5} parent=0 // pred_check
    _
  $region31: #{lenet5_forward.5} parent=0 // pred_check_branch
    %361 = sbr.rel (0) target = $region33
  $region32: #{lenet5_forward.5} parent=0 // pred_region
    _
  $region33: #{lenet5_forward.5} parent=0 // pred_fallthru
    _
  // Predicated region
  $region34: #{lenet5_forward.5} parent=0 // pred_check
    _
  $region35: #{lenet5_forward.5} parent=0 // pred_check_branch
    %363 = sbr.rel (0) target = $region37
  $region36: #{lenet5_forward.5} parent=0 // pred_region
    _
  $region37: #{lenet5_forward.5} parent=0 // pred_fallthru
    _

</llo_original>
